<compile_context>
chip_gen: v7x
topology: tpu7x:2x2x1
jax: 0.10.0
libtpu: 0.0.40
codegen_flags: <defaults>
</compile_context>

<pallas_src>
import math

import jax
import jax.numpy as jnp
from jax.experimental import pallas as pl
from jax.experimental.pallas import tpu as pltpu


def _pe_kernel(sa_ref, ca_ref, sb_ref, cb_ref, out_ref):
    """One (C, th, W) tile of the positional encoding.

    sa_ref/ca_ref: (C, 1, W)  sin/cos of the column phase (bias + pi/2 folded)
    sb_ref/cb_ref: (C, th, 1) sin/cos of the row phase for this row tile
    out_ref:       (C, th, W)
    """
    # sin(A + B) = sin(A)cos(B) + cos(A)sin(B).  The size-1 dims broadcast as
    # cheap sublane/lane splats; the rest is 2 mul + 1 add per element and a
    # single unmasked full-block store.
    out_ref[...] = sa_ref[...] * cb_ref[...] + ca_ref[...] * sb_ref[...]


def _choose_row_tile(h, c, w, budget_bytes):
    """Rows per output tile.

    Constraints: th == h, or (th % 8 == 0 and th divides h), so every block is
    sublane-aligned and covers the array exactly (no padded tail, no wrapper
    slice).  Prefer a single tile when it fits the budget (no per-step
    pipeline overhead); otherwise the largest aligned divisor that fits.
    """
    bytes_per_row = 4 * c * w
    if h * bytes_per_row <= budget_bytes:
        return h
    if h % 8 != 0:
        return h  # only th == h satisfies the sublane constraint
    max_rows = max(8, (budget_bytes // bytes_per_row) // 8 * 8)
    start = min(max_rows, h)
    for cand in range(start, 7, -8):
        if h % cand == 0:
            return cand
    return 8  # unreachable (h % 8 == 0), kept for safety


def position_embedding_random(size, gaussian_matrix, *,
                              tile_budget_bytes=8 * 1024 * 1024):
    """Pallas implementation of PositionEmbeddingRandom.forward.

    Args:
      size: (h, w) tuple of Python ints.
      gaussian_matrix: (2, num_pos_feats) float32 array.
      tile_budget_bytes: target bytes per output row-tile.

    Returns:
      (2 * num_pos_feats, h, w) float32 positional encoding.
    """
    h, w = int(size[0]), int(size[1])
    g = jnp.asarray(gaussian_matrix, jnp.float32)
    num_pos_feats = int(g.shape[1])
    c = 2 * num_pos_feats

    # Host-side fold of the grid->[-1,1] mapping and the 2*pi scale into
    # per-feature affine coefficients (tiny (F,) work):
    #   phase[f,i,j] = j*(4*pi*gx/w) + i*(4*pi*gy/h)
    #                  + 2*pi*((1/w - 1)*gx + (1/h - 1)*gy)
    two_pi = 2.0 * math.pi
    gx, gy = g[0], g[1]                                    # (F,)
    a = (2.0 * two_pi / w) * gx                            # column coefficient
    b = (2.0 * two_pi / h) * gy                            # row coefficient
    bias = two_pi * ((1.0 / w - 1.0) * gx + (1.0 / h - 1.0) * gy)

    cols = jnp.arange(w, dtype=jnp.float32)
    rows = jnp.arange(h, dtype=jnp.float32)
    col_phase = a[:, None] * cols[None, :] + bias[:, None]    # (F, W)
    row_phase = b[:, None] * rows[None, :]                     # (F, H)

    # Fold the cos half in as sin(x + pi/2): single code path, one store.
    col_phase = jnp.concatenate([col_phase, col_phase + 0.5 * math.pi], axis=0)  # (C, W)
    row_phase = jnp.concatenate([row_phase, row_phase], axis=0)                   # (C, H)

    # Tiny transcendental tables: 2*C*(H+W) sin/cos instead of 2*F*H*W.
    sa = jnp.sin(col_phase)[:, None, :]                    # (C, 1, W)
    ca = jnp.cos(col_phase)[:, None, :]                    # (C, 1, W)
    sb = jnp.sin(row_phase)[:, :, None]                    # (C, H, 1)
    cb = jnp.cos(row_phase)[:, :, None]                    # (C, H, 1)

    th = _choose_row_tile(h, c, w, tile_budget_bytes)
    num_tiles = h // th

    tile_bytes = 4 * c * th * w
    table_bytes = 4 * c * (2 * w + 2 * th)                 # per-step table blocks
    vmem_limit = 2 * (tile_bytes + table_bytes) + (2 << 20)  # dbl-buffer + slack
    vmem_limit = int(min(max(vmem_limit, 4 << 20), 64 << 20))

    cost = pl.CostEstimate(
        flops=3 * c * h * w,               # 2 mul + 1 add per output element
        transcendentals=0,                 # tables are precomputed outside
        bytes_accessed=4 * c * h * w + num_tiles * table_bytes,
    )

    return pl.pallas_call(
        _pe_kernel,
        out_shape=jax.ShapeDtypeStruct((c, h, w), jnp.float32),
        grid_spec=pltpu.PrefetchScalarGridSpec(
            num_scalar_prefetch=0,
            grid=(num_tiles,),
            in_specs=[
                pl.BlockSpec((c, 1, w), lambda i: (0, 0, 0)),   # sin(col phase)
                pl.BlockSpec((c, 1, w), lambda i: (0, 0, 0)),   # cos(col phase)
                pl.BlockSpec((c, th, 1), lambda i: (0, i, 0)),  # sin(row phase)
                pl.BlockSpec((c, th, 1), lambda i: (0, i, 0)),  # cos(row phase)
            ],
            out_specs=pl.BlockSpec((c, th, w), lambda i: (0, i, 0)),
        ),
        compiler_params=pltpu.CompilerParams(
            dimension_semantics=("parallel",),
            vmem_limit_bytes=vmem_limit,
        ),
        cost_estimate=cost,
    )(sa, ca, sb, cb)


def _reference(size, gaussian_matrix):
    """Pure-JAX reference mirroring the PyTorch module."""
    h, w = size
    grid = jnp.ones((h, w), jnp.float32)
    y_embed = (jnp.cumsum(grid, axis=0) - 0.5) / h
    x_embed = (jnp.cumsum(grid, axis=1) - 0.5) / w
    coords = jnp.stack([x_embed, y_embed], axis=-1)        # (h, w, 2)
    coords = 2 * coords - 1
    proj = jnp.einsum("hwk,kf->hwf", coords, gaussian_matrix,
                      precision=jax.lax.Precision.HIGHEST)
    proj = 2 * jnp.pi * proj
    pe = jnp.concatenate([jnp.sin(proj), jnp.cos(proj)], axis=-1)
    return jnp.transpose(pe, (2, 0, 1))


if __name__ == "__main__":
    key = jax.random.PRNGKey(0)

    # Deterministic setup consistent with the module's __init__.
    num_pos_feats = 32
    scale = 1.0
    gaussian_matrix = scale * jax.random.normal(key, (2, num_pos_feats), jnp.float32)

    # Case 1: small shape, single-tile path.
    size = (16, 16)  # (h, w)
    out = jax.block_until_ready(position_embedding_random(size, gaussian_matrix))
    ref = _reference(size, gaussian_matrix)
    assert out.shape == (2 * num_pos_feats, size[0], size[1]), out.shape
    assert out.dtype == jnp.float32
    err = float(jnp.max(jnp.abs(out - ref)))
    assert err < 1e-4, f"case 1 mismatch vs reference: max abs err {err}"

    # Case 2: exercise the multi-row-tile path with a deliberately tiny budget.
    size2 = (64, 64)
    out2 = jax.block_until_ready(
        position_embedding_random(size2, gaussian_matrix,
                                  tile_budget_bytes=256 * 1024))
    ref2 = _reference(size2, gaussian_matrix)
    assert out2.shape == (2 * num_pos_feats, size2[0], size2[1]), out2.shape
    err2 = float(jnp.max(jnp.abs(out2 - ref2)))
    assert err2 < 1e-4, f"case 2 mismatch vs reference: max abs err {err2}"

    print("KERNEL_OK")
</pallas_src>

<mosaic_0001>
module attributes {stable_mosaic.version = 11 : i64} {
  func.func @_pe_kernel(%arg0: i32, %arg1: memref<64x1x16xf32, #tpu.memory_space<vmem>>, %arg2: memref<64x1x16xf32, #tpu.memory_space<vmem>>, %arg3: memref<64x16x1xf32, #tpu.memory_space<vmem>>, %arg4: memref<64x16x1xf32, #tpu.memory_space<vmem>>, %arg5: memref<64x16x16xf32, #tpu.memory_space<vmem>>) attributes {dimension_semantics = [#tpu.dimension_semantics<parallel>], iteration_bounds = array<i64: 1>, scalar_prefetch = 0 : i64, scratch_operands = 0 : i64, tpu.core_type = #tpu.core_type<tc>, window_params = [{pipeline_mode = #tpu.pipeline_mode<synchronous>, transform_indices = @transform_0, window_bounds = array<i64: 64, 1, 16>}, {pipeline_mode = #tpu.pipeline_mode<synchronous>, transform_indices = @transform_1, window_bounds = array<i64: 64, 1, 16>}, {transform_indices = @transform_2, window_bounds = array<i64: 64, 16, 1>}, {transform_indices = @transform_3, window_bounds = array<i64: 64, 16, 1>}, {transform_indices = @transform_4, window_bounds = array<i64: 64, 16, 16>}]} {
    %c0 = arith.constant 0 : index
    %c0_0 = arith.constant 0 : index
    %c0_1 = arith.constant 0 : index
    %0 = vector.load %arg1[%c0, %c0_0, %c0_1] : memref<64x1x16xf32, #tpu.memory_space<vmem>>, vector<64x1x16xf32>
    %c0_2 = arith.constant 0 : index
    %c0_3 = arith.constant 0 : index
    %c0_4 = arith.constant 0 : index
    %1 = vector.load %arg4[%c0_2, %c0_3, %c0_4] : memref<64x16x1xf32, #tpu.memory_space<vmem>>, vector<64x16x1xf32>
    %2 = vector.broadcast %0 : vector<64x1x16xf32> to vector<64x16x16xf32>
    %3 = vector.broadcast %1 : vector<64x16x1xf32> to vector<64x16x16xf32>
    %4 = arith.mulf %2, %3 : vector<64x16x16xf32>
    %c0_5 = arith.constant 0 : index
    %c0_6 = arith.constant 0 : index
    %c0_7 = arith.constant 0 : index
    %5 = vector.load %arg2[%c0_5, %c0_6, %c0_7] : memref<64x1x16xf32, #tpu.memory_space<vmem>>, vector<64x1x16xf32>
    %c0_8 = arith.constant 0 : index
    %c0_9 = arith.constant 0 : index
    %c0_10 = arith.constant 0 : index
    %6 = vector.load %arg3[%c0_8, %c0_9, %c0_10] : memref<64x16x1xf32, #tpu.memory_space<vmem>>, vector<64x16x1xf32>
    %7 = vector.broadcast %5 : vector<64x1x16xf32> to vector<64x16x16xf32>
    %8 = vector.broadcast %6 : vector<64x16x1xf32> to vector<64x16x16xf32>
    %9 = arith.mulf %7, %8 : vector<64x16x16xf32>
    %10 = arith.addf %4, %9 : vector<64x16x16xf32>
    %c0_11 = arith.constant 0 : index
    %c0_12 = arith.constant 0 : index
    %c0_13 = arith.constant 0 : index
    %11 = vector.load %arg5[%c0_11, %c0_12, %c0_13] : memref<64x16x16xf32, #tpu.memory_space<vmem>>, vector<64x16x16xf32>
    tpu.vector_store %arg5[%c0_11, %c0_12, %c0_13], %10 {strides = array<i32>} : memref<64x16x16xf32, #tpu.memory_space<vmem>>, vector<64x16x16xf32>,
    return
  }
  func.func @transform_0(%arg0: i32) -> (i32, i32, i32) {
    %c0_i32 = arith.constant 0 : i32
    %c0_i32_0 = arith.constant 0 : i32
    %c0_i32_1 = arith.constant 0 : i32
    %c0_i32_2 = arith.constant 0 : i32
    return %c0_i32, %c0_i32_0, %c0_i32_1 : i32, i32, i32
  }
  func.func @transform_1(%arg0: i32) -> (i32, i32, i32) {
    %c0_i32 = arith.constant 0 : i32
    %c0_i32_0 = arith.constant 0 : i32
    %c0_i32_1 = arith.constant 0 : i32
    %c0_i32_2 = arith.constant 0 : i32
    return %c0_i32, %c0_i32_0, %c0_i32_1 : i32, i32, i32
  }
  func.func @transform_2(%arg0: i32) -> (i32, i32, i32) {
    %c0_i32 = arith.constant 0 : i32
    %c0_i32_0 = arith.constant 0 : i32
    %c0_i32_1 = arith.constant 0 : i32
    return %c0_i32, %arg0, %c0_i32_0 : i32, i32, i32
  }
  func.func @transform_3(%arg0: i32) -> (i32, i32, i32) {
    %c0_i32 = arith.constant 0 : i32
    %c0_i32_0 = arith.constant 0 : i32
    %c0_i32_1 = arith.constant 0 : i32
    return %c0_i32, %arg0, %c0_i32_0 : i32, i32, i32
  }
  func.func @transform_4(%arg0: i32) -> (i32, i32, i32) {
    %c0_i32 = arith.constant 0 : i32
    %c0_i32_0 = arith.constant 0 : i32
    %c0_i32_1 = arith.constant 0 : i32
    return %c0_i32, %arg0, %c0_i32_0 : i32, i32, i32
  }
}

</mosaic_0001>

<llo_original>
// kernel: tpu_custom_call.1
$region0: #{tpu_custom_call.1}
  #allocation0 [shape = 'u32[]', space=smem, size = 0x4, offset = 0x4, fixed_abs, tag = 'smem constant byte address 0x4 - core index']
  #allocation1 [shape = 'u32[144,128]{1,0:T(1,128)}', space=vmem, size = 0x12000, scoped, tag = 'internal scratch']
  %s0 = inlined_call_operand.vmem [shape: f32[64,1,16], index: 0, kind: input, shape index: {}]
  %s1 = inlined_call_operand.vmem [shape: f32[64,1,16], index: 1, kind: input, shape index: {}]
  %s2 = inlined_call_operand.vmem [shape: f32[64,16,1], index: 2, kind: input, shape index: {}]
  %s3 = inlined_call_operand.vmem [shape: f32[64,16,1], index: 3, kind: input, shape index: {}]
  %s4 = inlined_call_operand.vmem [shape: f32[64,16,16], index: 4, kind: output, shape index: {}]
  %s5 = sld [smem:[#allocation0]]
  $region26: #{tpu_custom_call.1} parent=0
    _
  %s7 = ssub.s32 1, %s5
  %s8 = scalar_select 0, %s7, %s5
  // Predicated region
  $region2: #{tpu_custom_call.1} parent=0 // pred_check
    _
  $region3: #{tpu_custom_call.1} parent=0 // pred_check_branch
    %10 = sbr.rel (0) target = $region5
  $region4: #{tpu_custom_call.1} parent=0 // pred_region
    _
  $region5: #{tpu_custom_call.1} parent=0 // pred_fallthru
    _
  // Predicated region
  $region6: #{tpu_custom_call.1} parent=0 // pred_check
    _
  $region7: #{tpu_custom_call.1} parent=0 // pred_check_branch
    %12 = sbr.rel (0) target = $region9
  $region8: #{tpu_custom_call.1} parent=0 // pred_region
    _
  $region9: #{tpu_custom_call.1} parent=0 // pred_fallthru
    _
  // Predicated region
  $region10: #{tpu_custom_call.1} parent=0 // pred_check
    _
  $region11: #{tpu_custom_call.1} parent=0 // pred_check_branch
    %14 = sbr.rel (0) target = $region13
  $region12: #{tpu_custom_call.1} parent=0 // pred_region
    _
  $region13: #{tpu_custom_call.1} parent=0 // pred_fallthru
    _
  // Predicated region
  $region14: #{tpu_custom_call.1} parent=0 // pred_check
    _
  $region15: #{tpu_custom_call.1} parent=0 // pred_check_branch
    %16 = sbr.rel (0) target = $region17
  $region16: #{tpu_custom_call.1} parent=0 // pred_region
    _
  $region17: #{tpu_custom_call.1} parent=0 // pred_fallthru
    _
  %v17 = vld [vmem:[%s0] sm:$0x1]
  %v18 = vld [vmem:[%s0 + $0x1] sm:$0x1]
  %v19 = vld [vmem:[%s0 + $0x2] sm:$0x1]
  %v20 = vld [vmem:[%s0 + $0x3] sm:$0x1]
  %v21 = vld [vmem:[%s0 + $0x4] sm:$0x1]
  %v22 = vld [vmem:[%s0 + $0x5] sm:$0x1]
  %v23 = vld [vmem:[%s0 + $0x6] sm:$0x1]
  %v24 = vld [vmem:[%s0 + $0x7] sm:$0x1]
  %v25 = vld [vmem:[%s0 + $0x8] sm:$0x1]
  %v26 = vld [vmem:[%s0 + $0x9] sm:$0x1]
  %v27 = vld [vmem:[%s0 + $0xa] sm:$0x1]
  %v28 = vld [vmem:[%s0 + $0xb] sm:$0x1]
  %v29 = vld [vmem:[%s0 + $0xc] sm:$0x1]
  %v30 = vld [vmem:[%s0 + $0xd] sm:$0x1]
  %v31 = vld [vmem:[%s0 + $0xe] sm:$0x1]
  %v32 = vld [vmem:[%s0 + $0xf] sm:$0x1]
  %v33 = vld [vmem:[%s0 + $0x10] sm:$0x1]
  %v34 = vld [vmem:[%s0 + $0x11] sm:$0x1]
  %v35 = vld [vmem:[%s0 + $0x12] sm:$0x1]
  %v36 = vld [vmem:[%s0 + $0x13] sm:$0x1]
  %v37 = vld [vmem:[%s0 + $0x14] sm:$0x1]
  %v38 = vld [vmem:[%s0 + $0x15] sm:$0x1]
  %v39 = vld [vmem:[%s0 + $0x16] sm:$0x1]
  %v40 = vld [vmem:[%s0 + $0x17] sm:$0x1]
  %v41 = vld [vmem:[%s0 + $0x18] sm:$0x1]
  %v42 = vld [vmem:[%s0 + $0x19] sm:$0x1]
  %v43 = vld [vmem:[%s0 + $0x1a] sm:$0x1]
  %v44 = vld [vmem:[%s0 + $0x1b] sm:$0x1]
  %v45 = vld [vmem:[%s0 + $0x1c] sm:$0x1]
  %v46 = vld [vmem:[%s0 + $0x1d] sm:$0x1]
  %v47 = vld [vmem:[%s0 + $0x1e] sm:$0x1]
  %v48 = vld [vmem:[%s0 + $0x1f] sm:$0x1]
  %v49 = vld [vmem:[%s0 + $0x20] sm:$0x1]
  %v50 = vld [vmem:[%s0 + $0x21] sm:$0x1]
  %v51 = vld [vmem:[%s0 + $0x22] sm:$0x1]
  %v52 = vld [vmem:[%s0 + $0x23] sm:$0x1]
  %v53 = vld [vmem:[%s0 + $0x24] sm:$0x1]
  %v54 = vld [vmem:[%s0 + $0x25] sm:$0x1]
  %v55 = vld [vmem:[%s0 + $0x26] sm:$0x1]
  %v56 = vld [vmem:[%s0 + $0x27] sm:$0x1]
  %v57 = vld [vmem:[%s0 + $0x28] sm:$0x1]
  %v58 = vld [vmem:[%s0 + $0x29] sm:$0x1]
  %v59 = vld [vmem:[%s0 + $0x2a] sm:$0x1]
  %v60 = vld [vmem:[%s0 + $0x2b] sm:$0x1]
  %v61 = vld [vmem:[%s0 + $0x2c] sm:$0x1]
  %v62 = vld [vmem:[%s0 + $0x2d] sm:$0x1]
  %v63 = vld [vmem:[%s0 + $0x2e] sm:$0x1]
  %v64 = vld [vmem:[%s0 + $0x2f] sm:$0x1]
  %v65 = vld [vmem:[%s0 + $0x30] sm:$0x1]
  %v66 = vld [vmem:[%s0 + $0x31] sm:$0x1]
  %v67 = vld [vmem:[%s0 + $0x32] sm:$0x1]
  %v68 = vld [vmem:[%s0 + $0x33] sm:$0x1]
  %v69 = vld [vmem:[%s0 + $0x34] sm:$0x1]
  %v70 = vld [vmem:[%s0 + $0x35] sm:$0x1]
  %v71 = vld [vmem:[%s0 + $0x36] sm:$0x1]
  %v72 = vld [vmem:[%s0 + $0x37] sm:$0x1]
  %v73 = vld [vmem:[%s0 + $0x38] sm:$0x1]
  %v74 = vld [vmem:[%s0 + $0x39] sm:$0x1]
  %v75 = vld [vmem:[%s0 + $0x3a] sm:$0x1]
  %v76 = vld [vmem:[%s0 + $0x3b] sm:$0x1]
  %v77 = vld [vmem:[%s0 + $0x3c] sm:$0x1]
  %v78 = vld [vmem:[%s0 + $0x3d] sm:$0x1]
  %v79 = vld [vmem:[%s0 + $0x3e] sm:$0x1]
  %v80 = vld [vmem:[%s0 + $0x3f] sm:$0x1]
  %v81 = vld [vmem:[%s3] sm:$0xff]
  %v82 = vld [vmem:[%s3 + $0x8] sm:$0xff]
  %v83 = vld [vmem:[%s3 + $0x10] sm:$0xff]
  %v84 = vld [vmem:[%s3 + $0x18] sm:$0xff]
  %v85 = vld [vmem:[%s3 + $0x20] sm:$0xff]
  %v86 = vld [vmem:[%s3 + $0x28] sm:$0xff]
  %v87 = vld [vmem:[%s3 + $0x30] sm:$0xff]
  %v88 = vld [vmem:[%s3 + $0x38] sm:$0xff]
  %v89 = vld [vmem:[%s3 + $0x40] sm:$0xff]
  %v90 = vld [vmem:[%s3 + $0x48] sm:$0xff]
  %v91 = vld [vmem:[%s3 + $0x50] sm:$0xff]
  %v92 = vld [vmem:[%s3 + $0x58] sm:$0xff]
  %v93 = vld [vmem:[%s3 + $0x60] sm:$0xff]
  %v94 = vld [vmem:[%s3 + $0x68] sm:$0xff]
  %v95 = vld [vmem:[%s3 + $0x70] sm:$0xff]
  %v96 = vld [vmem:[%s3 + $0x78] sm:$0xff]
  %v97 = vld [vmem:[%s3 + $0x80] sm:$0xff]
  %v98 = vld [vmem:[%s3 + $0x88] sm:$0xff]
  %v99 = vld [vmem:[%s3 + $0x90] sm:$0xff]
  %v100 = vld [vmem:[%s3 + $0x98] sm:$0xff]
  %v101 = vld [vmem:[%s3 + $0xa0] sm:$0xff]
  %v102 = vld [vmem:[%s3 + $0xa8] sm:$0xff]
  %v103 = vld [vmem:[%s3 + $0xb0] sm:$0xff]
  %v104 = vld [vmem:[%s3 + $0xb8] sm:$0xff]
  %v105 = vld [vmem:[%s3 + $0xc0] sm:$0xff]
  %v106 = vld [vmem:[%s3 + $0xc8] sm:$0xff]
  %v107 = vld [vmem:[%s3 + $0xd0] sm:$0xff]
  %v108 = vld [vmem:[%s3 + $0xd8] sm:$0xff]
  %v109 = vld [vmem:[%s3 + $0xe0] sm:$0xff]
  %v110 = vld [vmem:[%s3 + $0xe8] sm:$0xff]
  %v111 = vld [vmem:[%s3 + $0xf0] sm:$0xff]
  %v112 = vld [vmem:[%s3 + $0xf8] sm:$0xff]
  %v113 = vld [vmem:[%s3 + $0x100] sm:$0xff]
  %v114 = vld [vmem:[%s3 + $0x108] sm:$0xff]
  %v115 = vld [vmem:[%s3 + $0x110] sm:$0xff]
  %v116 = vld [vmem:[%s3 + $0x118] sm:$0xff]
  %v117 = vld [vmem:[%s3 + $0x120] sm:$0xff]
  %v118 = vld [vmem:[%s3 + $0x128] sm:$0xff]
  %v119 = vld [vmem:[%s3 + $0x130] sm:$0xff]
  %v120 = vld [vmem:[%s3 + $0x138] sm:$0xff]
  %v121 = vld [vmem:[%s3 + $0x140] sm:$0xff]
  %v122 = vld [vmem:[%s3 + $0x148] sm:$0xff]
  %v123 = vld [vmem:[%s3 + $0x150] sm:$0xff]
  %v124 = vld [vmem:[%s3 + $0x158] sm:$0xff]
  %v125 = vld [vmem:[%s3 + $0x160] sm:$0xff]
  %v126 = vld [vmem:[%s3 + $0x168] sm:$0xff]
  %v127 = vld [vmem:[%s3 + $0x170] sm:$0xff]
  %v128 = vld [vmem:[%s3 + $0x178] sm:$0xff]
  %v129 = vld [vmem:[%s3 + $0x180] sm:$0xff]
  %v130 = vld [vmem:[%s3 + $0x188] sm:$0xff]
  %v131 = vld [vmem:[%s3 + $0x190] sm:$0xff]
  %v132 = vld [vmem:[%s3 + $0x198] sm:$0xff]
  %v133 = vld [vmem:[%s3 + $0x1a0] sm:$0xff]
  %v134 = vld [vmem:[%s3 + $0x1a8] sm:$0xff]
  %v135 = vld [vmem:[%s3 + $0x1b0] sm:$0xff]
  %v136 = vld [vmem:[%s3 + $0x1b8] sm:$0xff]
  %v137 = vld [vmem:[%s3 + $0x1c0] sm:$0xff]
  %v138 = vld [vmem:[%s3 + $0x1c8] sm:$0xff]
  %v139 = vld [vmem:[%s3 + $0x1d0] sm:$0xff]
  %v140 = vld [vmem:[%s3 + $0x1d8] sm:$0xff]
  %v141 = vld [vmem:[%s3 + $0x1e0] sm:$0xff]
  %v142 = vld [vmem:[%s3 + $0x1e8] sm:$0xff]
  %v143 = vld [vmem:[%s3 + $0x1f0] sm:$0xff]
  %v144 = vld [vmem:[%s3 + $0x1f8] sm:$0xff]
  %v145 = vld [vmem:[%s3 + $0x200] sm:$0xff]
  %v146 = vld [vmem:[%s3 + $0x208] sm:$0xff]
  %v147 = vld [vmem:[%s3 + $0x210] sm:$0xff]
  %v148 = vld [vmem:[%s3 + $0x218] sm:$0xff]
  %v149 = vld [vmem:[%s3 + $0x220] sm:$0xff]
  %v150 = vld [vmem:[%s3 + $0x228] sm:$0xff]
  %v151 = vld [vmem:[%s3 + $0x230] sm:$0xff]
  %v152 = vld [vmem:[%s3 + $0x238] sm:$0xff]
  %v153 = vld [vmem:[%s3 + $0x240] sm:$0xff]
  %v154 = vld [vmem:[%s3 + $0x248] sm:$0xff]
  %v155 = vld [vmem:[%s3 + $0x250] sm:$0xff]
  %v156 = vld [vmem:[%s3 + $0x258] sm:$0xff]
  %v157 = vld [vmem:[%s3 + $0x260] sm:$0xff]
  %v158 = vld [vmem:[%s3 + $0x268] sm:$0xff]
  %v159 = vld [vmem:[%s3 + $0x270] sm:$0xff]
  %v160 = vld [vmem:[%s3 + $0x278] sm:$0xff]
  %v161 = vld [vmem:[%s3 + $0x280] sm:$0xff]
  %v162 = vld [vmem:[%s3 + $0x288] sm:$0xff]
  %v163 = vld [vmem:[%s3 + $0x290] sm:$0xff]
  %v164 = vld [vmem:[%s3 + $0x298] sm:$0xff]
  %v165 = vld [vmem:[%s3 + $0x2a0] sm:$0xff]
  %v166 = vld [vmem:[%s3 + $0x2a8] sm:$0xff]
  %v167 = vld [vmem:[%s3 + $0x2b0] sm:$0xff]
  %v168 = vld [vmem:[%s3 + $0x2b8] sm:$0xff]
  %v169 = vld [vmem:[%s3 + $0x2c0] sm:$0xff]
  %v170 = vld [vmem:[%s3 + $0x2c8] sm:$0xff]
  %v171 = vld [vmem:[%s3 + $0x2d0] sm:$0xff]
  %v172 = vld [vmem:[%s3 + $0x2d8] sm:$0xff]
  %v173 = vld [vmem:[%s3 + $0x2e0] sm:$0xff]
  %v174 = vld [vmem:[%s3 + $0x2e8] sm:$0xff]
  %v175 = vld [vmem:[%s3 + $0x2f0] sm:$0xff]
  %v176 = vld [vmem:[%s3 + $0x2f8] sm:$0xff]
  %v177 = vld [vmem:[%s3 + $0x300] sm:$0xff]
  %v178 = vld [vmem:[%s3 + $0x308] sm:$0xff]
  %v179 = vld [vmem:[%s3 + $0x310] sm:$0xff]
  %v180 = vld [vmem:[%s3 + $0x318] sm:$0xff]
  %v181 = vld [vmem:[%s3 + $0x320] sm:$0xff]
  %v182 = vld [vmem:[%s3 + $0x328] sm:$0xff]
  %v183 = vld [vmem:[%s3 + $0x330] sm:$0xff]
  %v184 = vld [vmem:[%s3 + $0x338] sm:$0xff]
  %v185 = vld [vmem:[%s3 + $0x340] sm:$0xff]
  %v186 = vld [vmem:[%s3 + $0x348] sm:$0xff]
  %v187 = vld [vmem:[%s3 + $0x350] sm:$0xff]
  %v188 = vld [vmem:[%s3 + $0x358] sm:$0xff]
  %v189 = vld [vmem:[%s3 + $0x360] sm:$0xff]
  %v190 = vld [vmem:[%s3 + $0x368] sm:$0xff]
  %v191 = vld [vmem:[%s3 + $0x370] sm:$0xff]
  %v192 = vld [vmem:[%s3 + $0x378] sm:$0xff]
  %v193 = vld [vmem:[%s3 + $0x380] sm:$0xff]
  %v194 = vld [vmem:[%s3 + $0x388] sm:$0xff]
  %v195 = vld [vmem:[%s3 + $0x390] sm:$0xff]
  %v196 = vld [vmem:[%s3 + $0x398] sm:$0xff]
  %v197 = vld [vmem:[%s3 + $0x3a0] sm:$0xff]
  %v198 = vld [vmem:[%s3 + $0x3a8] sm:$0xff]
  %v199 = vld [vmem:[%s3 + $0x3b0] sm:$0xff]
  %v200 = vld [vmem:[%s3 + $0x3b8] sm:$0xff]
  %v201 = vld [vmem:[%s3 + $0x3c0] sm:$0xff]
  %v202 = vld [vmem:[%s3 + $0x3c8] sm:$0xff]
  %v203 = vld [vmem:[%s3 + $0x3d0] sm:$0xff]
  %v204 = vld [vmem:[%s3 + $0x3d8] sm:$0xff]
  %v205 = vld [vmem:[%s3 + $0x3e0] sm:$0xff]
  %v206 = vld [vmem:[%s3 + $0x3e8] sm:$0xff]
  %v207 = vld [vmem:[%s3 + $0x3f0] sm:$0xff]
  %v208 = vld [vmem:[%s3 + $0x3f8] sm:$0xff]
  %v273 = vlaneseq
  %v274 = vshrl.u32 %v273, 7
  %v275 = vsub.s32 0, %v274
  %v276 = vrot.slane %v17, %v275
  %v277 = vlaneseq
  %v278 = vshrl.u32 %v277, 7
  %v279 = vsub.s32 0, %v278
  %v280 = vrot.slane %v18, %v279
  %v281 = vlaneseq
  %v282 = vshrl.u32 %v281, 7
  %v283 = vsub.s32 0, %v282
  %v284 = vrot.slane %v19, %v283
  %v285 = vlaneseq
  %v286 = vshrl.u32 %v285, 7
  %v287 = vsub.s32 0, %v286
  %v288 = vrot.slane %v20, %v287
  %v289 = vlaneseq
  %v290 = vshrl.u32 %v289, 7
  %v291 = vsub.s32 0, %v290
  %v292 = vrot.slane %v21, %v291
  %v293 = vlaneseq
  %v294 = vshrl.u32 %v293, 7
  %v295 = vsub.s32 0, %v294
  %v296 = vrot.slane %v22, %v295
  %v297 = vlaneseq
  %v298 = vshrl.u32 %v297, 7
  %v299 = vsub.s32 0, %v298
  %v300 = vrot.slane %v23, %v299
  %v301 = vlaneseq
  %v302 = vshrl.u32 %v301, 7
  %v303 = vsub.s32 0, %v302
  %v304 = vrot.slane %v24, %v303
  %v305 = vlaneseq
  %v306 = vshrl.u32 %v305, 7
  %v307 = vsub.s32 0, %v306
  %v308 = vrot.slane %v25, %v307
  %v309 = vlaneseq
  %v310 = vshrl.u32 %v309, 7
  %v311 = vsub.s32 0, %v310
  %v312 = vrot.slane %v26, %v311
  %v313 = vlaneseq
  %v314 = vshrl.u32 %v313, 7
  %v315 = vsub.s32 0, %v314
  %v316 = vrot.slane %v27, %v315
  %v317 = vlaneseq
  %v318 = vshrl.u32 %v317, 7
  %v319 = vsub.s32 0, %v318
  %v320 = vrot.slane %v28, %v319
  %v321 = vlaneseq
  %v322 = vshrl.u32 %v321, 7
  %v323 = vsub.s32 0, %v322
  %v324 = vrot.slane %v29, %v323
  %v325 = vlaneseq
  %v326 = vshrl.u32 %v325, 7
  %v327 = vsub.s32 0, %v326
  %v328 = vrot.slane %v30, %v327
  %v329 = vlaneseq
  %v330 = vshrl.u32 %v329, 7
  %v331 = vsub.s32 0, %v330
  %v332 = vrot.slane %v31, %v331
  %v333 = vlaneseq
  %v334 = vshrl.u32 %v333, 7
  %v335 = vsub.s32 0, %v334
  %v336 = vrot.slane %v32, %v335
  %v337 = vlaneseq
  %v338 = vshrl.u32 %v337, 7
  %v339 = vsub.s32 0, %v338
  %v340 = vrot.slane %v33, %v339
  %v341 = vlaneseq
  %v342 = vshrl.u32 %v341, 7
  %v343 = vsub.s32 0, %v342
  %v344 = vrot.slane %v34, %v343
  %v345 = vlaneseq
  %v346 = vshrl.u32 %v345, 7
  %v347 = vsub.s32 0, %v346
  %v348 = vrot.slane %v35, %v347
  %v349 = vlaneseq
  %v350 = vshrl.u32 %v349, 7
  %v351 = vsub.s32 0, %v350
  %v352 = vrot.slane %v36, %v351
  %v353 = vlaneseq
  %v354 = vshrl.u32 %v353, 7
  %v355 = vsub.s32 0, %v354
  %v356 = vrot.slane %v37, %v355
  %v357 = vlaneseq
  %v358 = vshrl.u32 %v357, 7
  %v359 = vsub.s32 0, %v358
  %v360 = vrot.slane %v38, %v359
  %v361 = vlaneseq
  %v362 = vshrl.u32 %v361, 7
  %v363 = vsub.s32 0, %v362
  %v364 = vrot.slane %v39, %v363
  %v365 = vlaneseq
  %v366 = vshrl.u32 %v365, 7
  %v367 = vsub.s32 0, %v366
  %v368 = vrot.slane %v40, %v367
  %v369 = vlaneseq
  %v370 = vshrl.u32 %v369, 7
  %v371 = vsub.s32 0, %v370
  %v372 = vrot.slane %v41, %v371
  %v373 = vlaneseq
  %v374 = vshrl.u32 %v373, 7
  %v375 = vsub.s32 0, %v374
  %v376 = vrot.slane %v42, %v375
  %v377 = vlaneseq
  %v378 = vshrl.u32 %v377, 7
  %v379 = vsub.s32 0, %v378
  %v380 = vrot.slane %v43, %v379
  %v381 = vlaneseq
  %v382 = vshrl.u32 %v381, 7
  %v383 = vsub.s32 0, %v382
  %v384 = vrot.slane %v44, %v383
  %v385 = vlaneseq
  %v386 = vshrl.u32 %v385, 7
  %v387 = vsub.s32 0, %v386
  %v388 = vrot.slane %v45, %v387
  %v389 = vlaneseq
  %v390 = vshrl.u32 %v389, 7
  %v391 = vsub.s32 0, %v390
  %v392 = vrot.slane %v46, %v391
  %v393 = vlaneseq
  %v394 = vshrl.u32 %v393, 7
  %v395 = vsub.s32 0, %v394
  %v396 = vrot.slane %v47, %v395
  %v397 = vlaneseq
  %v398 = vshrl.u32 %v397, 7
  %v399 = vsub.s32 0, %v398
  %v400 = vrot.slane %v48, %v399
  %v401 = vlaneseq
  %v402 = vshrl.u32 %v401, 7
  %v403 = vsub.s32 0, %v402
  %v404 = vrot.slane %v49, %v403
  %v405 = vlaneseq
  %v406 = vshrl.u32 %v405, 7
  %v407 = vsub.s32 0, %v406
  %v408 = vrot.slane %v50, %v407
  %v409 = vlaneseq
  %v410 = vshrl.u32 %v409, 7
  %v411 = vsub.s32 0, %v410
  %v412 = vrot.slane %v51, %v411
  %v413 = vlaneseq
  %v414 = vshrl.u32 %v413, 7
  %v415 = vsub.s32 0, %v414
  %v416 = vrot.slane %v52, %v415
  %v417 = vlaneseq
  %v418 = vshrl.u32 %v417, 7
  %v419 = vsub.s32 0, %v418
  %v420 = vrot.slane %v53, %v419
  %v421 = vlaneseq
  %v422 = vshrl.u32 %v421, 7
  %v423 = vsub.s32 0, %v422
  %v424 = vrot.slane %v54, %v423
  %v425 = vlaneseq
  %v426 = vshrl.u32 %v425, 7
  %v427 = vsub.s32 0, %v426
  %v428 = vrot.slane %v55, %v427
  %v429 = vlaneseq
  %v430 = vshrl.u32 %v429, 7
  %v431 = vsub.s32 0, %v430
  %v432 = vrot.slane %v56, %v431
  %v433 = vlaneseq
  %v434 = vshrl.u32 %v433, 7
  %v435 = vsub.s32 0, %v434
  %v436 = vrot.slane %v57, %v435
  %v437 = vlaneseq
  %v438 = vshrl.u32 %v437, 7
  %v439 = vsub.s32 0, %v438
  %v440 = vrot.slane %v58, %v439
  %v441 = vlaneseq
  %v442 = vshrl.u32 %v441, 7
  %v443 = vsub.s32 0, %v442
  %v444 = vrot.slane %v59, %v443
  %v445 = vlaneseq
  %v446 = vshrl.u32 %v445, 7
  %v447 = vsub.s32 0, %v446
  %v448 = vrot.slane %v60, %v447
  %v449 = vlaneseq
  %v450 = vshrl.u32 %v449, 7
  %v451 = vsub.s32 0, %v450
  %v452 = vrot.slane %v61, %v451
  %v453 = vlaneseq
  %v454 = vshrl.u32 %v453, 7
  %v455 = vsub.s32 0, %v454
  %v456 = vrot.slane %v62, %v455
  %v457 = vlaneseq
  %v458 = vshrl.u32 %v457, 7
  %v459 = vsub.s32 0, %v458
  %v460 = vrot.slane %v63, %v459
  %v461 = vlaneseq
  %v462 = vshrl.u32 %v461, 7
  %v463 = vsub.s32 0, %v462
  %v464 = vrot.slane %v64, %v463
  %v465 = vlaneseq
  %v466 = vshrl.u32 %v465, 7
  %v467 = vsub.s32 0, %v466
  %v468 = vrot.slane %v65, %v467
  %v469 = vlaneseq
  %v470 = vshrl.u32 %v469, 7
  %v471 = vsub.s32 0, %v470
  %v472 = vrot.slane %v66, %v471
  %v473 = vlaneseq
  %v474 = vshrl.u32 %v473, 7
  %v475 = vsub.s32 0, %v474
  %v476 = vrot.slane %v67, %v475
  %v477 = vlaneseq
  %v478 = vshrl.u32 %v477, 7
  %v479 = vsub.s32 0, %v478
  %v480 = vrot.slane %v68, %v479
  %v481 = vlaneseq
  %v482 = vshrl.u32 %v481, 7
  %v483 = vsub.s32 0, %v482
  %v484 = vrot.slane %v69, %v483
  %v485 = vlaneseq
  %v486 = vshrl.u32 %v485, 7
  %v487 = vsub.s32 0, %v486
  %v488 = vrot.slane %v70, %v487
  %v489 = vlaneseq
  %v490 = vshrl.u32 %v489, 7
  %v491 = vsub.s32 0, %v490
  %v492 = vrot.slane %v71, %v491
  %v493 = vlaneseq
  %v494 = vshrl.u32 %v493, 7
  %v495 = vsub.s32 0, %v494
  %v496 = vrot.slane %v72, %v495
  %v497 = vlaneseq
  %v498 = vshrl.u32 %v497, 7
  %v499 = vsub.s32 0, %v498
  %v500 = vrot.slane %v73, %v499
  %v501 = vlaneseq
  %v502 = vshrl.u32 %v501, 7
  %v503 = vsub.s32 0, %v502
  %v504 = vrot.slane %v74, %v503
  %v505 = vlaneseq
  %v506 = vshrl.u32 %v505, 7
  %v507 = vsub.s32 0, %v506
  %v508 = vrot.slane %v75, %v507
  %v509 = vlaneseq
  %v510 = vshrl.u32 %v509, 7
  %v511 = vsub.s32 0, %v510
  %v512 = vrot.slane %v76, %v511
  %v513 = vlaneseq
  %v514 = vshrl.u32 %v513, 7
  %v515 = vsub.s32 0, %v514
  %v516 = vrot.slane %v77, %v515
  %v517 = vlaneseq
  %v518 = vshrl.u32 %v517, 7
  %v519 = vsub.s32 0, %v518
  %v520 = vrot.slane %v78, %v519
  %v521 = vlaneseq
  %v522 = vshrl.u32 %v521, 7
  %v523 = vsub.s32 0, %v522
  %v524 = vrot.slane %v79, %v523
  %v525 = vlaneseq
  %v526 = vshrl.u32 %v525, 7
  %v527 = vsub.s32 0, %v526
  %v528 = vrot.slane %v80, %v527
  %594 = vset.pattern.permute.xlu0 0
  %595 = vperm.xlu0 %594, %v81
  %v596 = vpop.permute.xlu0 %595
  %599 = vset.pattern.permute.xlu0 0
  %600 = vperm.xlu0 %599, %v82
  %v601 = vpop.permute.xlu0 %600
  %604 = vset.pattern.permute.xlu0 0
  %605 = vperm.xlu0 %604, %v83
  %v606 = vpop.permute.xlu0 %605
  %609 = vset.pattern.permute.xlu0 0
  %610 = vperm.xlu0 %609, %v84
  %v611 = vpop.permute.xlu0 %610
  %614 = vset.pattern.permute.xlu0 0
  %615 = vperm.xlu0 %614, %v85
  %v616 = vpop.permute.xlu0 %615
  %619 = vset.pattern.permute.xlu0 0
  %620 = vperm.xlu0 %619, %v86
  %v621 = vpop.permute.xlu0 %620
  %624 = vset.pattern.permute.xlu0 0
  %625 = vperm.xlu0 %624, %v87
  %v626 = vpop.permute.xlu0 %625
  %629 = vset.pattern.permute.xlu0 0
  %630 = vperm.xlu0 %629, %v88
  %v631 = vpop.permute.xlu0 %630
  %634 = vset.pattern.permute.xlu0 0
  %635 = vperm.xlu0 %634, %v89
  %v636 = vpop.permute.xlu0 %635
  %639 = vset.pattern.permute.xlu0 0
  %640 = vperm.xlu0 %639, %v90
  %v641 = vpop.permute.xlu0 %640
  %644 = vset.pattern.permute.xlu0 0
  %645 = vperm.xlu0 %644, %v91
  %v646 = vpop.permute.xlu0 %645
  %649 = vset.pattern.permute.xlu0 0
  %650 = vperm.xlu0 %649, %v92
  %v651 = vpop.permute.xlu0 %650
  %654 = vset.pattern.permute.xlu0 0
  %655 = vperm.xlu0 %654, %v93
  %v656 = vpop.permute.xlu0 %655
  %659 = vset.pattern.permute.xlu0 0
  %660 = vperm.xlu0 %659, %v94
  %v661 = vpop.permute.xlu0 %660
  %664 = vset.pattern.permute.xlu0 0
  %665 = vperm.xlu0 %664, %v95
  %v666 = vpop.permute.xlu0 %665
  %669 = vset.pattern.permute.xlu0 0
  %670 = vperm.xlu0 %669, %v96
  %v671 = vpop.permute.xlu0 %670
  %674 = vset.pattern.permute.xlu0 0
  %675 = vperm.xlu0 %674, %v97
  %v676 = vpop.permute.xlu0 %675
  %679 = vset.pattern.permute.xlu0 0
  %680 = vperm.xlu0 %679, %v98
  %v681 = vpop.permute.xlu0 %680
  %684 = vset.pattern.permute.xlu0 0
  %685 = vperm.xlu0 %684, %v99
  %v686 = vpop.permute.xlu0 %685
  %689 = vset.pattern.permute.xlu0 0
  %690 = vperm.xlu0 %689, %v100
  %v691 = vpop.permute.xlu0 %690
  %694 = vset.pattern.permute.xlu0 0
  %695 = vperm.xlu0 %694, %v101
  %v696 = vpop.permute.xlu0 %695
  %699 = vset.pattern.permute.xlu0 0
  %700 = vperm.xlu0 %699, %v102
  %v701 = vpop.permute.xlu0 %700
  %704 = vset.pattern.permute.xlu0 0
  %705 = vperm.xlu0 %704, %v103
  %v706 = vpop.permute.xlu0 %705
  %709 = vset.pattern.permute.xlu0 0
  %710 = vperm.xlu0 %709, %v104
  %v711 = vpop.permute.xlu0 %710
  %714 = vset.pattern.permute.xlu0 0
  %715 = vperm.xlu0 %714, %v105
  %v716 = vpop.permute.xlu0 %715
  %719 = vset.pattern.permute.xlu0 0
  %720 = vperm.xlu0 %719, %v106
  %v721 = vpop.permute.xlu0 %720
  %724 = vset.pattern.permute.xlu0 0
  %725 = vperm.xlu0 %724, %v107
  %v726 = vpop.permute.xlu0 %725
  %729 = vset.pattern.permute.xlu0 0
  %730 = vperm.xlu0 %729, %v108
  %v731 = vpop.permute.xlu0 %730
  %734 = vset.pattern.permute.xlu0 0
  %735 = vperm.xlu0 %734, %v109
  %v736 = vpop.permute.xlu0 %735
  %739 = vset.pattern.permute.xlu0 0
  %740 = vperm.xlu0 %739, %v110
  %v741 = vpop.permute.xlu0 %740
  %744 = vset.pattern.permute.xlu0 0
  %745 = vperm.xlu0 %744, %v111
  %v746 = vpop.permute.xlu0 %745
  %749 = vset.pattern.permute.xlu0 0
  %750 = vperm.xlu0 %749, %v112
  %v751 = vpop.permute.xlu0 %750
  %754 = vset.pattern.permute.xlu0 0
  %755 = vperm.xlu0 %754, %v113
  %v756 = vpop.permute.xlu0 %755
  %759 = vset.pattern.permute.xlu0 0
  %760 = vperm.xlu0 %759, %v114
  %v761 = vpop.permute.xlu0 %760
  %764 = vset.pattern.permute.xlu0 0
  %765 = vperm.xlu0 %764, %v115
  %v766 = vpop.permute.xlu0 %765
  %769 = vset.pattern.permute.xlu0 0
  %770 = vperm.xlu0 %769, %v116
  %v771 = vpop.permute.xlu0 %770
  %774 = vset.pattern.permute.xlu0 0
  %775 = vperm.xlu0 %774, %v117
  %v776 = vpop.permute.xlu0 %775
  %779 = vset.pattern.permute.xlu0 0
  %780 = vperm.xlu0 %779, %v118
  %v781 = vpop.permute.xlu0 %780
  %784 = vset.pattern.permute.xlu0 0
  %785 = vperm.xlu0 %784, %v119
  %v786 = vpop.permute.xlu0 %785
  %789 = vset.pattern.permute.xlu0 0
  %790 = vperm.xlu0 %789, %v120
  %v791 = vpop.permute.xlu0 %790
  %794 = vset.pattern.permute.xlu0 0
  %795 = vperm.xlu0 %794, %v121
  %v796 = vpop.permute.xlu0 %795
  %799 = vset.pattern.permute.xlu0 0
  %800 = vperm.xlu0 %799, %v122
  %v801 = vpop.permute.xlu0 %800
  %804 = vset.pattern.permute.xlu0 0
  %805 = vperm.xlu0 %804, %v123
  %v806 = vpop.permute.xlu0 %805
  %809 = vset.pattern.permute.xlu0 0
  %810 = vperm.xlu0 %809, %v124
  %v811 = vpop.permute.xlu0 %810
  %814 = vset.pattern.permute.xlu0 0
  %815 = vperm.xlu0 %814, %v125
  %v816 = vpop.permute.xlu0 %815
  %819 = vset.pattern.permute.xlu0 0
  %820 = vperm.xlu0 %819, %v126
  %v821 = vpop.permute.xlu0 %820
  %824 = vset.pattern.permute.xlu0 0
  %825 = vperm.xlu0 %824, %v127
  %v826 = vpop.permute.xlu0 %825
  %829 = vset.pattern.permute.xlu0 0
  %830 = vperm.xlu0 %829, %v128
  %v831 = vpop.permute.xlu0 %830
  %834 = vset.pattern.permute.xlu0 0
  %835 = vperm.xlu0 %834, %v129
  %v836 = vpop.permute.xlu0 %835
  %839 = vset.pattern.permute.xlu0 0
  %840 = vperm.xlu0 %839, %v130
  %v841 = vpop.permute.xlu0 %840
  %844 = vset.pattern.permute.xlu0 0
  %845 = vperm.xlu0 %844, %v131
  %v846 = vpop.permute.xlu0 %845
  %849 = vset.pattern.permute.xlu0 0
  %850 = vperm.xlu0 %849, %v132
  %v851 = vpop.permute.xlu0 %850
  %854 = vset.pattern.permute.xlu0 0
  %855 = vperm.xlu0 %854, %v133
  %v856 = vpop.permute.xlu0 %855
  %859 = vset.pattern.permute.xlu0 0
  %860 = vperm.xlu0 %859, %v134
  %v861 = vpop.permute.xlu0 %860
  %864 = vset.pattern.permute.xlu0 0
  %865 = vperm.xlu0 %864, %v135
  %v866 = vpop.permute.xlu0 %865
  %869 = vset.pattern.permute.xlu0 0
  %870 = vperm.xlu0 %869, %v136
  %v871 = vpop.permute.xlu0 %870
  %874 = vset.pattern.permute.xlu0 0
  %875 = vperm.xlu0 %874, %v137
  %v876 = vpop.permute.xlu0 %875
  %879 = vset.pattern.permute.xlu0 0
  %880 = vperm.xlu0 %879, %v138
  %v881 = vpop.permute.xlu0 %880
  %884 = vset.pattern.permute.xlu0 0
  %885 = vperm.xlu0 %884, %v139
  %v886 = vpop.permute.xlu0 %885
  %889 = vset.pattern.permute.xlu0 0
  %890 = vperm.xlu0 %889, %v140
  %v891 = vpop.permute.xlu0 %890
  %894 = vset.pattern.permute.xlu0 0
  %895 = vperm.xlu0 %894, %v141
  %v896 = vpop.permute.xlu0 %895
  %899 = vset.pattern.permute.xlu0 0
  %900 = vperm.xlu0 %899, %v142
  %v901 = vpop.permute.xlu0 %900
  %904 = vset.pattern.permute.xlu0 0
  %905 = vperm.xlu0 %904, %v143
  %v906 = vpop.permute.xlu0 %905
  %909 = vset.pattern.permute.xlu0 0
  %910 = vperm.xlu0 %909, %v144
  %v911 = vpop.permute.xlu0 %910
  %914 = vset.pattern.permute.xlu0 0
  %915 = vperm.xlu0 %914, %v145
  %v916 = vpop.permute.xlu0 %915
  %919 = vset.pattern.permute.xlu0 0
  %920 = vperm.xlu0 %919, %v146
  %v921 = vpop.permute.xlu0 %920
  %924 = vset.pattern.permute.xlu0 0
  %925 = vperm.xlu0 %924, %v147
  %v926 = vpop.permute.xlu0 %925
  %929 = vset.pattern.permute.xlu0 0
  %930 = vperm.xlu0 %929, %v148
  %v931 = vpop.permute.xlu0 %930
  %934 = vset.pattern.permute.xlu0 0
  %935 = vperm.xlu0 %934, %v149
  %v936 = vpop.permute.xlu0 %935
  %939 = vset.pattern.permute.xlu0 0
  %940 = vperm.xlu0 %939, %v150
  %v941 = vpop.permute.xlu0 %940
  %944 = vset.pattern.permute.xlu0 0
  %945 = vperm.xlu0 %944, %v151
  %v946 = vpop.permute.xlu0 %945
  %949 = vset.pattern.permute.xlu0 0
  %950 = vperm.xlu0 %949, %v152
  %v951 = vpop.permute.xlu0 %950
  %954 = vset.pattern.permute.xlu0 0
  %955 = vperm.xlu0 %954, %v153
  %v956 = vpop.permute.xlu0 %955
  %959 = vset.pattern.permute.xlu0 0
  %960 = vperm.xlu0 %959, %v154
  %v961 = vpop.permute.xlu0 %960
  %964 = vset.pattern.permute.xlu0 0
  %965 = vperm.xlu0 %964, %v155
  %v966 = vpop.permute.xlu0 %965
  %969 = vset.pattern.permute.xlu0 0
  %970 = vperm.xlu0 %969, %v156
  %v971 = vpop.permute.xlu0 %970
  %974 = vset.pattern.permute.xlu0 0
  %975 = vperm.xlu0 %974, %v157
  %v976 = vpop.permute.xlu0 %975
  %979 = vset.pattern.permute.xlu0 0
  %980 = vperm.xlu0 %979, %v158
  %v981 = vpop.permute.xlu0 %980
  %984 = vset.pattern.permute.xlu0 0
  %985 = vperm.xlu0 %984, %v159
  %v986 = vpop.permute.xlu0 %985
  %989 = vset.pattern.permute.xlu0 0
  %990 = vperm.xlu0 %989, %v160
  %v991 = vpop.permute.xlu0 %990
  %994 = vset.pattern.permute.xlu0 0
  %995 = vperm.xlu0 %994, %v161
  %v996 = vpop.permute.xlu0 %995
  %999 = vset.pattern.permute.xlu0 0
  %1000 = vperm.xlu0 %999, %v162
  %v1001 = vpop.permute.xlu0 %1000
  %1004 = vset.pattern.permute.xlu0 0
  %1005 = vperm.xlu0 %1004, %v163
  %v1006 = vpop.permute.xlu0 %1005
  %1009 = vset.pattern.permute.xlu0 0
  %1010 = vperm.xlu0 %1009, %v164
  %v1011 = vpop.permute.xlu0 %1010
  %1014 = vset.pattern.permute.xlu0 0
  %1015 = vperm.xlu0 %1014, %v165
  %v1016 = vpop.permute.xlu0 %1015
  %1019 = vset.pattern.permute.xlu0 0
  %1020 = vperm.xlu0 %1019, %v166
  %v1021 = vpop.permute.xlu0 %1020
  %1024 = vset.pattern.permute.xlu0 0
  %1025 = vperm.xlu0 %1024, %v167
  %v1026 = vpop.permute.xlu0 %1025
  %1029 = vset.pattern.permute.xlu0 0
  %1030 = vperm.xlu0 %1029, %v168
  %v1031 = vpop.permute.xlu0 %1030
  %1034 = vset.pattern.permute.xlu0 0
  %1035 = vperm.xlu0 %1034, %v169
  %v1036 = vpop.permute.xlu0 %1035
  %1039 = vset.pattern.permute.xlu0 0
  %1040 = vperm.xlu0 %1039, %v170
  %v1041 = vpop.permute.xlu0 %1040
  %1044 = vset.pattern.permute.xlu0 0
  %1045 = vperm.xlu0 %1044, %v171
  %v1046 = vpop.permute.xlu0 %1045
  %1049 = vset.pattern.permute.xlu0 0
  %1050 = vperm.xlu0 %1049, %v172
  %v1051 = vpop.permute.xlu0 %1050
  %1054 = vset.pattern.permute.xlu0 0
  %1055 = vperm.xlu0 %1054, %v173
  %v1056 = vpop.permute.xlu0 %1055
  %1059 = vset.pattern.permute.xlu0 0
  %1060 = vperm.xlu0 %1059, %v174
  %v1061 = vpop.permute.xlu0 %1060
  %1064 = vset.pattern.permute.xlu0 0
  %1065 = vperm.xlu0 %1064, %v175
  %v1066 = vpop.permute.xlu0 %1065
  %1069 = vset.pattern.permute.xlu0 0
  %1070 = vperm.xlu0 %1069, %v176
  %v1071 = vpop.permute.xlu0 %1070
  %1074 = vset.pattern.permute.xlu0 0
  %1075 = vperm.xlu0 %1074, %v177
  %v1076 = vpop.permute.xlu0 %1075
  %1079 = vset.pattern.permute.xlu0 0
  %1080 = vperm.xlu0 %1079, %v178
  %v1081 = vpop.permute.xlu0 %1080
  %1084 = vset.pattern.permute.xlu0 0
  %1085 = vperm.xlu0 %1084, %v179
  %v1086 = vpop.permute.xlu0 %1085
  %1089 = vset.pattern.permute.xlu0 0
  %1090 = vperm.xlu0 %1089, %v180
  %v1091 = vpop.permute.xlu0 %1090
  %1094 = vset.pattern.permute.xlu0 0
  %1095 = vperm.xlu0 %1094, %v181
  %v1096 = vpop.permute.xlu0 %1095
  %1099 = vset.pattern.permute.xlu0 0
  %1100 = vperm.xlu0 %1099, %v182
  %v1101 = vpop.permute.xlu0 %1100
  %1104 = vset.pattern.permute.xlu0 0
  %1105 = vperm.xlu0 %1104, %v183
  %v1106 = vpop.permute.xlu0 %1105
  %1109 = vset.pattern.permute.xlu0 0
  %1110 = vperm.xlu0 %1109, %v184
  %v1111 = vpop.permute.xlu0 %1110
  %1114 = vset.pattern.permute.xlu0 0
  %1115 = vperm.xlu0 %1114, %v185
  %v1116 = vpop.permute.xlu0 %1115
  %1119 = vset.pattern.permute.xlu0 0
  %1120 = vperm.xlu0 %1119, %v186
  %v1121 = vpop.permute.xlu0 %1120
  %1124 = vset.pattern.permute.xlu0 0
  %1125 = vperm.xlu0 %1124, %v187
  %v1126 = vpop.permute.xlu0 %1125
  %1129 = vset.pattern.permute.xlu0 0
  %1130 = vperm.xlu0 %1129, %v188
  %v1131 = vpop.permute.xlu0 %1130
  %1134 = vset.pattern.permute.xlu0 0
  %1135 = vperm.xlu0 %1134, %v189
  %v1136 = vpop.permute.xlu0 %1135
  %1139 = vset.pattern.permute.xlu0 0
  %1140 = vperm.xlu0 %1139, %v190
  %v1141 = vpop.permute.xlu0 %1140
  %1144 = vset.pattern.permute.xlu0 0
  %1145 = vperm.xlu0 %1144, %v191
  %v1146 = vpop.permute.xlu0 %1145
  %1149 = vset.pattern.permute.xlu0 0
  %1150 = vperm.xlu0 %1149, %v192
  %v1151 = vpop.permute.xlu0 %1150
  %1154 = vset.pattern.permute.xlu0 0
  %1155 = vperm.xlu0 %1154, %v193
  %v1156 = vpop.permute.xlu0 %1155
  %1159 = vset.pattern.permute.xlu0 0
  %1160 = vperm.xlu0 %1159, %v194
  %v1161 = vpop.permute.xlu0 %1160
  %1164 = vset.pattern.permute.xlu0 0
  %1165 = vperm.xlu0 %1164, %v195
  %v1166 = vpop.permute.xlu0 %1165
  %1169 = vset.pattern.permute.xlu0 0
  %1170 = vperm.xlu0 %1169, %v196
  %v1171 = vpop.permute.xlu0 %1170
  %1174 = vset.pattern.permute.xlu0 0
  %1175 = vperm.xlu0 %1174, %v197
  %v1176 = vpop.permute.xlu0 %1175
  %1179 = vset.pattern.permute.xlu0 0
  %1180 = vperm.xlu0 %1179, %v198
  %v1181 = vpop.permute.xlu0 %1180
  %1184 = vset.pattern.permute.xlu0 0
  %1185 = vperm.xlu0 %1184, %v199
  %v1186 = vpop.permute.xlu0 %1185
  %1189 = vset.pattern.permute.xlu0 0
  %1190 = vperm.xlu0 %1189, %v200
  %v1191 = vpop.permute.xlu0 %1190
  %1194 = vset.pattern.permute.xlu0 0
  %1195 = vperm.xlu0 %1194, %v201
  %v1196 = vpop.permute.xlu0 %1195
  %1199 = vset.pattern.permute.xlu0 0
  %1200 = vperm.xlu0 %1199, %v202
  %v1201 = vpop.permute.xlu0 %1200
  %1204 = vset.pattern.permute.xlu0 0
  %1205 = vperm.xlu0 %1204, %v203
  %v1206 = vpop.permute.xlu0 %1205
  %1209 = vset.pattern.permute.xlu0 0
  %1210 = vperm.xlu0 %1209, %v204
  %v1211 = vpop.permute.xlu0 %1210
  %1214 = vset.pattern.permute.xlu0 0
  %1215 = vperm.xlu0 %1214, %v205
  %v1216 = vpop.permute.xlu0 %1215
  %1219 = vset.pattern.permute.xlu0 0
  %1220 = vperm.xlu0 %1219, %v206
  %v1221 = vpop.permute.xlu0 %1220
  %1224 = vset.pattern.permute.xlu0 0
  %1225 = vperm.xlu0 %1224, %v207
  %v1226 = vpop.permute.xlu0 %1225
  %1229 = vset.pattern.permute.xlu0 0
  %1230 = vperm.xlu0 %1229, %v208
  %v1231 = vpop.permute.xlu0 %1230
  %v1233 = vmul.f32 %v276, %v596
  %v1234 = vmul.f32 %v276, %v601
  %v1235 = vmul.f32 %v280, %v606
  %v1236 = vmul.f32 %v280, %v611
  %v1237 = vmul.f32 %v284, %v616
  %v1238 = vmul.f32 %v284, %v621
  %v1239 = vmul.f32 %v288, %v626
  %v1240 = vmul.f32 %v288, %v631
  %v1241 = vmul.f32 %v292, %v636
  %v1242 = vmul.f32 %v292, %v641
  %v1243 = vmul.f32 %v296, %v646
  %v1244 = vmul.f32 %v296, %v651
  %v1245 = vmul.f32 %v300, %v656
  %v1246 = vmul.f32 %v300, %v661
  %v1247 = vmul.f32 %v304, %v666
  %v1248 = vmul.f32 %v304, %v671
  %v1249 = vmul.f32 %v308, %v676
  %v1250 = vmul.f32 %v308, %v681
  %v1251 = vmul.f32 %v312, %v686
  %v1252 = vmul.f32 %v312, %v691
  %v1253 = vmul.f32 %v316, %v696
  %v1254 = vmul.f32 %v316, %v701
  %v1255 = vmul.f32 %v320, %v706
  %v1256 = vmul.f32 %v320, %v711
  %v1257 = vmul.f32 %v324, %v716
  %v1258 = vmul.f32 %v324, %v721
  %v1259 = vmul.f32 %v328, %v726
  %v1260 = vmul.f32 %v328, %v731
  %v1261 = vmul.f32 %v332, %v736
  %v1262 = vmul.f32 %v332, %v741
  %v1263 = vmul.f32 %v336, %v746
  %v1264 = vmul.f32 %v336, %v751
  %v1265 = vmul.f32 %v340, %v756
  %v1266 = vmul.f32 %v340, %v761
  %v1267 = vmul.f32 %v344, %v766
  %v1268 = vmul.f32 %v344, %v771
  %v1269 = vmul.f32 %v348, %v776
  %v1270 = vmul.f32 %v348, %v781
  %v1271 = vmul.f32 %v352, %v786
  %v1272 = vmul.f32 %v352, %v791
  %v1273 = vmul.f32 %v356, %v796
  %v1274 = vmul.f32 %v356, %v801
  %v1275 = vmul.f32 %v360, %v806
  %v1276 = vmul.f32 %v360, %v811
  %v1277 = vmul.f32 %v364, %v816
  %v1278 = vmul.f32 %v364, %v821
  %v1279 = vmul.f32 %v368, %v826
  %v1280 = vmul.f32 %v368, %v831
  %v1281 = vmul.f32 %v372, %v836
  %v1282 = vmul.f32 %v372, %v841
  %v1283 = vmul.f32 %v376, %v846
  %v1284 = vmul.f32 %v376, %v851
  %v1285 = vmul.f32 %v380, %v856
  %v1286 = vmul.f32 %v380, %v861
  %v1287 = vmul.f32 %v384, %v866
  %v1288 = vmul.f32 %v384, %v871
  %v1289 = vmul.f32 %v388, %v876
  %v1290 = vmul.f32 %v388, %v881
  %v1291 = vmul.f32 %v392, %v886
  %v1292 = vmul.f32 %v392, %v891
  %v1293 = vmul.f32 %v396, %v896
  %v1294 = vmul.f32 %v396, %v901
  %v1295 = vmul.f32 %v400, %v906
  %v1296 = vmul.f32 %v400, %v911
  %v1297 = vmul.f32 %v404, %v916
  %v1298 = vmul.f32 %v404, %v921
  %v1299 = vmul.f32 %v408, %v926
  %v1300 = vmul.f32 %v408, %v931
  %v1301 = vmul.f32 %v412, %v936
  %v1302 = vmul.f32 %v412, %v941
  %v1303 = vmul.f32 %v416, %v946
  %v1304 = vmul.f32 %v416, %v951
  %v1305 = vmul.f32 %v420, %v956
  %v1306 = vmul.f32 %v420, %v961
  %v1307 = vmul.f32 %v424, %v966
  %v1308 = vmul.f32 %v424, %v971
  %v1309 = vmul.f32 %v428, %v976
  %v1310 = vmul.f32 %v428, %v981
  %v1311 = vmul.f32 %v432, %v986
  %v1312 = vmul.f32 %v432, %v991
  %v1313 = vmul.f32 %v436, %v996
  %v1314 = vmul.f32 %v436, %v1001
  %v1315 = vmul.f32 %v440, %v1006
  %v1316 = vmul.f32 %v440, %v1011
  %v1317 = vmul.f32 %v444, %v1016
  %v1318 = vmul.f32 %v444, %v1021
  %v1319 = vmul.f32 %v448, %v1026
  %v1320 = vmul.f32 %v448, %v1031
  %v1321 = vmul.f32 %v452, %v1036
  %v1322 = vmul.f32 %v452, %v1041
  %v1323 = vmul.f32 %v456, %v1046
  %v1324 = vmul.f32 %v456, %v1051
  %v1325 = vmul.f32 %v460, %v1056
  %v1326 = vmul.f32 %v460, %v1061
  %v1327 = vmul.f32 %v464, %v1066
  %v1328 = vmul.f32 %v464, %v1071
  %v1329 = vmul.f32 %v468, %v1076
  %v1330 = vmul.f32 %v468, %v1081
  %v1331 = vmul.f32 %v472, %v1086
  %v1332 = vmul.f32 %v472, %v1091
  %v1333 = vmul.f32 %v476, %v1096
  %v1334 = vmul.f32 %v476, %v1101
  %v1335 = vmul.f32 %v480, %v1106
  %v1336 = vmul.f32 %v480, %v1111
  %v1337 = vmul.f32 %v484, %v1116
  %v1338 = vmul.f32 %v484, %v1121
  %v1339 = vmul.f32 %v488, %v1126
  %v1340 = vmul.f32 %v488, %v1131
  %v1341 = vmul.f32 %v492, %v1136
  %v1342 = vmul.f32 %v492, %v1141
  %v1343 = vmul.f32 %v496, %v1146
  %v1344 = vmul.f32 %v496, %v1151
  %v1345 = vmul.f32 %v500, %v1156
  %v1346 = vmul.f32 %v500, %v1161
  %v1347 = vmul.f32 %v504, %v1166
  %v1348 = vmul.f32 %v504, %v1171
  %v1349 = vmul.f32 %v508, %v1176
  %v1350 = vmul.f32 %v508, %v1181
  %v1351 = vmul.f32 %v512, %v1186
  %v1352 = vmul.f32 %v512, %v1191
  %v1353 = vmul.f32 %v516, %v1196
  %v1354 = vmul.f32 %v516, %v1201
  %v1355 = vmul.f32 %v520, %v1206
  %v1356 = vmul.f32 %v520, %v1211
  %v1357 = vmul.f32 %v524, %v1216
  %v1358 = vmul.f32 %v524, %v1221
  %v1359 = vmul.f32 %v528, %v1226
  %v1360 = vmul.f32 %v528, %v1231
  %v1361 = vld [vmem:[%s1] sm:$0x1]
  %v1362 = vld [vmem:[%s1 + $0x1] sm:$0x1]
  %v1363 = vld [vmem:[%s1 + $0x2] sm:$0x1]
  %v1364 = vld [vmem:[%s1 + $0x3] sm:$0x1]
  %v1365 = vld [vmem:[%s1 + $0x4] sm:$0x1]
  %v1366 = vld [vmem:[%s1 + $0x5] sm:$0x1]
  %v1367 = vld [vmem:[%s1 + $0x6] sm:$0x1]
  %v1368 = vld [vmem:[%s1 + $0x7] sm:$0x1]
  %v1369 = vld [vmem:[%s1 + $0x8] sm:$0x1]
  %v1370 = vld [vmem:[%s1 + $0x9] sm:$0x1]
  %v1371 = vld [vmem:[%s1 + $0xa] sm:$0x1]
  %v1372 = vld [vmem:[%s1 + $0xb] sm:$0x1]
  %v1373 = vld [vmem:[%s1 + $0xc] sm:$0x1]
  %v1374 = vld [vmem:[%s1 + $0xd] sm:$0x1]
  %v1375 = vld [vmem:[%s1 + $0xe] sm:$0x1]
  %v1376 = vld [vmem:[%s1 + $0xf] sm:$0x1]
  %v1377 = vld [vmem:[%s1 + $0x10] sm:$0x1]
  %v1378 = vld [vmem:[%s1 + $0x11] sm:$0x1]
  %v1379 = vld [vmem:[%s1 + $0x12] sm:$0x1]
  %v1380 = vld [vmem:[%s1 + $0x13] sm:$0x1]
  %v1381 = vld [vmem:[%s1 + $0x14] sm:$0x1]
  %v1382 = vld [vmem:[%s1 + $0x15] sm:$0x1]
  %v1383 = vld [vmem:[%s1 + $0x16] sm:$0x1]
  %v1384 = vld [vmem:[%s1 + $0x17] sm:$0x1]
  %v1385 = vld [vmem:[%s1 + $0x18] sm:$0x1]
  %v1386 = vld [vmem:[%s1 + $0x19] sm:$0x1]
  %v1387 = vld [vmem:[%s1 + $0x1a] sm:$0x1]
  %v1388 = vld [vmem:[%s1 + $0x1b] sm:$0x1]
  %v1389 = vld [vmem:[%s1 + $0x1c] sm:$0x1]
  %v1390 = vld [vmem:[%s1 + $0x1d] sm:$0x1]
  %v1391 = vld [vmem:[%s1 + $0x1e] sm:$0x1]
  %v1392 = vld [vmem:[%s1 + $0x1f] sm:$0x1]
  %v1393 = vld [vmem:[%s1 + $0x20] sm:$0x1]
  %v1394 = vld [vmem:[%s1 + $0x21] sm:$0x1]
  %v1395 = vld [vmem:[%s1 + $0x22] sm:$0x1]
  %v1396 = vld [vmem:[%s1 + $0x23] sm:$0x1]
  %v1397 = vld [vmem:[%s1 + $0x24] sm:$0x1]
  %v1398 = vld [vmem:[%s1 + $0x25] sm:$0x1]
  %v1399 = vld [vmem:[%s1 + $0x26] sm:$0x1]
  %v1400 = vld [vmem:[%s1 + $0x27] sm:$0x1]
  %v1401 = vld [vmem:[%s1 + $0x28] sm:$0x1]
  %v1402 = vld [vmem:[%s1 + $0x29] sm:$0x1]
  %v1403 = vld [vmem:[%s1 + $0x2a] sm:$0x1]
  %v1404 = vld [vmem:[%s1 + $0x2b] sm:$0x1]
  %v1405 = vld [vmem:[%s1 + $0x2c] sm:$0x1]
  %v1406 = vld [vmem:[%s1 + $0x2d] sm:$0x1]
  %v1407 = vld [vmem:[%s1 + $0x2e] sm:$0x1]
  %v1408 = vld [vmem:[%s1 + $0x2f] sm:$0x1]
  %v1409 = vld [vmem:[%s1 + $0x30] sm:$0x1]
  %v1410 = vld [vmem:[%s1 + $0x31] sm:$0x1]
  %v1411 = vld [vmem:[%s1 + $0x32] sm:$0x1]
  %v1412 = vld [vmem:[%s1 + $0x33] sm:$0x1]
  %v1413 = vld [vmem:[%s1 + $0x34] sm:$0x1]
  %v1414 = vld [vmem:[%s1 + $0x35] sm:$0x1]
  %v1415 = vld [vmem:[%s1 + $0x36] sm:$0x1]
  %v1416 = vld [vmem:[%s1 + $0x37] sm:$0x1]
  %v1417 = vld [vmem:[%s1 + $0x38] sm:$0x1]
  %v1418 = vld [vmem:[%s1 + $0x39] sm:$0x1]
  %v1419 = vld [vmem:[%s1 + $0x3a] sm:$0x1]
  %v1420 = vld [vmem:[%s1 + $0x3b] sm:$0x1]
  %v1421 = vld [vmem:[%s1 + $0x3c] sm:$0x1]
  %v1422 = vld [vmem:[%s1 + $0x3d] sm:$0x1]
  %v1423 = vld [vmem:[%s1 + $0x3e] sm:$0x1]
  %v1424 = vld [vmem:[%s1 + $0x3f] sm:$0x1]
  %v1425 = vld [vmem:[%s2] sm:$0xff]
  %v1426 = vld [vmem:[%s2 + $0x8] sm:$0xff]
  %v1427 = vld [vmem:[%s2 + $0x10] sm:$0xff]
  %v1428 = vld [vmem:[%s2 + $0x18] sm:$0xff]
  %v1429 = vld [vmem:[%s2 + $0x20] sm:$0xff]
  %v1430 = vld [vmem:[%s2 + $0x28] sm:$0xff]
  %v1431 = vld [vmem:[%s2 + $0x30] sm:$0xff]
  %v1432 = vld [vmem:[%s2 + $0x38] sm:$0xff]
  %v1433 = vld [vmem:[%s2 + $0x40] sm:$0xff]
  %v1434 = vld [vmem:[%s2 + $0x48] sm:$0xff]
  %v1435 = vld [vmem:[%s2 + $0x50] sm:$0xff]
  %v1436 = vld [vmem:[%s2 + $0x58] sm:$0xff]
  %v1437 = vld [vmem:[%s2 + $0x60] sm:$0xff]
  %v1438 = vld [vmem:[%s2 + $0x68] sm:$0xff]
  %v1439 = vld [vmem:[%s2 + $0x70] sm:$0xff]
  %v1440 = vld [vmem:[%s2 + $0x78] sm:$0xff]
  %v1441 = vld [vmem:[%s2 + $0x80] sm:$0xff]
  %v1442 = vld [vmem:[%s2 + $0x88] sm:$0xff]
  %v1443 = vld [vmem:[%s2 + $0x90] sm:$0xff]
  %v1444 = vld [vmem:[%s2 + $0x98] sm:$0xff]
  %v1445 = vld [vmem:[%s2 + $0xa0] sm:$0xff]
  %v1446 = vld [vmem:[%s2 + $0xa8] sm:$0xff]
  %v1447 = vld [vmem:[%s2 + $0xb0] sm:$0xff]
  %v1448 = vld [vmem:[%s2 + $0xb8] sm:$0xff]
  %v1449 = vld [vmem:[%s2 + $0xc0] sm:$0xff]
  %v1450 = vld [vmem:[%s2 + $0xc8] sm:$0xff]
  %v1451 = vld [vmem:[%s2 + $0xd0] sm:$0xff]
  %v1452 = vld [vmem:[%s2 + $0xd8] sm:$0xff]
  %v1453 = vld [vmem:[%s2 + $0xe0] sm:$0xff]
  %v1454 = vld [vmem:[%s2 + $0xe8] sm:$0xff]
  %v1455 = vld [vmem:[%s2 + $0xf0] sm:$0xff]
  %v1456 = vld [vmem:[%s2 + $0xf8] sm:$0xff]
  %v1457 = vld [vmem:[%s2 + $0x100] sm:$0xff]
  %v1458 = vld [vmem:[%s2 + $0x108] sm:$0xff]
  %v1459 = vld [vmem:[%s2 + $0x110] sm:$0xff]
  %v1460 = vld [vmem:[%s2 + $0x118] sm:$0xff]
  %v1461 = vld [vmem:[%s2 + $0x120] sm:$0xff]
  %v1462 = vld [vmem:[%s2 + $0x128] sm:$0xff]
  %v1463 = vld [vmem:[%s2 + $0x130] sm:$0xff]
  %v1464 = vld [vmem:[%s2 + $0x138] sm:$0xff]
  %v1465 = vld [vmem:[%s2 + $0x140] sm:$0xff]
  %v1466 = vld [vmem:[%s2 + $0x148] sm:$0xff]
  %v1467 = vld [vmem:[%s2 + $0x150] sm:$0xff]
  %v1468 = vld [vmem:[%s2 + $0x158] sm:$0xff]
  %v1469 = vld [vmem:[%s2 + $0x160] sm:$0xff]
  %v1470 = vld [vmem:[%s2 + $0x168] sm:$0xff]
  %v1471 = vld [vmem:[%s2 + $0x170] sm:$0xff]
  %v1472 = vld [vmem:[%s2 + $0x178] sm:$0xff]
  %v1473 = vld [vmem:[%s2 + $0x180] sm:$0xff]
  %v1474 = vld [vmem:[%s2 + $0x188] sm:$0xff]
  %v1475 = vld [vmem:[%s2 + $0x190] sm:$0xff]
  %v1476 = vld [vmem:[%s2 + $0x198] sm:$0xff]
  %v1477 = vld [vmem:[%s2 + $0x1a0] sm:$0xff]
  %v1478 = vld [vmem:[%s2 + $0x1a8] sm:$0xff]
  %v1479 = vld [vmem:[%s2 + $0x1b0] sm:$0xff]
  %v1480 = vld [vmem:[%s2 + $0x1b8] sm:$0xff]
  %v1481 = vld [vmem:[%s2 + $0x1c0] sm:$0xff]
  %v1482 = vld [vmem:[%s2 + $0x1c8] sm:$0xff]
  %v1483 = vld [vmem:[%s2 + $0x1d0] sm:$0xff]
  %v1484 = vld [vmem:[%s2 + $0x1d8] sm:$0xff]
  %v1485 = vld [vmem:[%s2 + $0x1e0] sm:$0xff]
  %v1486 = vld [vmem:[%s2 + $0x1e8] sm:$0xff]
  %v1487 = vld [vmem:[%s2 + $0x1f0] sm:$0xff]
  %v1488 = vld [vmem:[%s2 + $0x1f8] sm:$0xff]
  %v1489 = vld [vmem:[%s2 + $0x200] sm:$0xff]
  %v1490 = vld [vmem:[%s2 + $0x208] sm:$0xff]
  %v1491 = vld [vmem:[%s2 + $0x210] sm:$0xff]
  %v1492 = vld [vmem:[%s2 + $0x218] sm:$0xff]
  %v1493 = vld [vmem:[%s2 + $0x220] sm:$0xff]
  %v1494 = vld [vmem:[%s2 + $0x228] sm:$0xff]
  %v1495 = vld [vmem:[%s2 + $0x230] sm:$0xff]
  %v1496 = vld [vmem:[%s2 + $0x238] sm:$0xff]
  %v1497 = vld [vmem:[%s2 + $0x240] sm:$0xff]
  %v1498 = vld [vmem:[%s2 + $0x248] sm:$0xff]
  %v1499 = vld [vmem:[%s2 + $0x250] sm:$0xff]
  %v1500 = vld [vmem:[%s2 + $0x258] sm:$0xff]
  %v1501 = vld [vmem:[%s2 + $0x260] sm:$0xff]
  %v1502 = vld [vmem:[%s2 + $0x268] sm:$0xff]
  %v1503 = vld [vmem:[%s2 + $0x270] sm:$0xff]
  %v1504 = vld [vmem:[%s2 + $0x278] sm:$0xff]
  %v1505 = vld [vmem:[%s2 + $0x280] sm:$0xff]
  %v1506 = vld [vmem:[%s2 + $0x288] sm:$0xff]
  %v1507 = vld [vmem:[%s2 + $0x290] sm:$0xff]
  %v1508 = vld [vmem:[%s2 + $0x298] sm:$0xff]
  %v1509 = vld [vmem:[%s2 + $0x2a0] sm:$0xff]
  %v1510 = vld [vmem:[%s2 + $0x2a8] sm:$0xff]
  %v1511 = vld [vmem:[%s2 + $0x2b0] sm:$0xff]
  %v1512 = vld [vmem:[%s2 + $0x2b8] sm:$0xff]
  %v1513 = vld [vmem:[%s2 + $0x2c0] sm:$0xff]
  %v1514 = vld [vmem:[%s2 + $0x2c8] sm:$0xff]
  %v1515 = vld [vmem:[%s2 + $0x2d0] sm:$0xff]
  %v1516 = vld [vmem:[%s2 + $0x2d8] sm:$0xff]
  %v1517 = vld [vmem:[%s2 + $0x2e0] sm:$0xff]
  %v1518 = vld [vmem:[%s2 + $0x2e8] sm:$0xff]
  %v1519 = vld [vmem:[%s2 + $0x2f0] sm:$0xff]
  %v1520 = vld [vmem:[%s2 + $0x2f8] sm:$0xff]
  %v1521 = vld [vmem:[%s2 + $0x300] sm:$0xff]
  %v1522 = vld [vmem:[%s2 + $0x308] sm:$0xff]
  %v1523 = vld [vmem:[%s2 + $0x310] sm:$0xff]
  %v1524 = vld [vmem:[%s2 + $0x318] sm:$0xff]
  %v1525 = vld [vmem:[%s2 + $0x320] sm:$0xff]
  %v1526 = vld [vmem:[%s2 + $0x328] sm:$0xff]
  %v1527 = vld [vmem:[%s2 + $0x330] sm:$0xff]
  %v1528 = vld [vmem:[%s2 + $0x338] sm:$0xff]
  %v1529 = vld [vmem:[%s2 + $0x340] sm:$0xff]
  %v1530 = vld [vmem:[%s2 + $0x348] sm:$0xff]
  %v1531 = vld [vmem:[%s2 + $0x350] sm:$0xff]
  %v1532 = vld [vmem:[%s2 + $0x358] sm:$0xff]
  %v1533 = vld [vmem:[%s2 + $0x360] sm:$0xff]
  %v1534 = vld [vmem:[%s2 + $0x368] sm:$0xff]
  %v1535 = vld [vmem:[%s2 + $0x370] sm:$0xff]
  %v1536 = vld [vmem:[%s2 + $0x378] sm:$0xff]
  %v1537 = vld [vmem:[%s2 + $0x380] sm:$0xff]
  %v1538 = vld [vmem:[%s2 + $0x388] sm:$0xff]
  %v1539 = vld [vmem:[%s2 + $0x390] sm:$0xff]
  %v1540 = vld [vmem:[%s2 + $0x398] sm:$0xff]
  %v1541 = vld [vmem:[%s2 + $0x3a0] sm:$0xff]
  %v1542 = vld [vmem:[%s2 + $0x3a8] sm:$0xff]
  %v1543 = vld [vmem:[%s2 + $0x3b0] sm:$0xff]
  %v1544 = vld [vmem:[%s2 + $0x3b8] sm:$0xff]
  %v1545 = vld [vmem:[%s2 + $0x3c0] sm:$0xff]
  %v1546 = vld [vmem:[%s2 + $0x3c8] sm:$0xff]
  %v1547 = vld [vmem:[%s2 + $0x3d0] sm:$0xff]
  %v1548 = vld [vmem:[%s2 + $0x3d8] sm:$0xff]
  %v1549 = vld [vmem:[%s2 + $0x3e0] sm:$0xff]
  %v1550 = vld [vmem:[%s2 + $0x3e8] sm:$0xff]
  %v1551 = vld [vmem:[%s2 + $0x3f0] sm:$0xff]
  %v1552 = vld [vmem:[%s2 + $0x3f8] sm:$0xff]
  %v1617 = vlaneseq
  %v1618 = vshrl.u32 %v1617, 7
  %v1619 = vsub.s32 0, %v1618
  %v1620 = vrot.slane %v1361, %v1619
  %v1621 = vlaneseq
  %v1622 = vshrl.u32 %v1621, 7
  %v1623 = vsub.s32 0, %v1622
  %v1624 = vrot.slane %v1362, %v1623
  %v1625 = vlaneseq
  %v1626 = vshrl.u32 %v1625, 7
  %v1627 = vsub.s32 0, %v1626
  %v1628 = vrot.slane %v1363, %v1627
  %v1629 = vlaneseq
  %v1630 = vshrl.u32 %v1629, 7
  %v1631 = vsub.s32 0, %v1630
  %v1632 = vrot.slane %v1364, %v1631
  %v1633 = vlaneseq
  %v1634 = vshrl.u32 %v1633, 7
  %v1635 = vsub.s32 0, %v1634
  %v1636 = vrot.slane %v1365, %v1635
  %v1637 = vlaneseq
  %v1638 = vshrl.u32 %v1637, 7
  %v1639 = vsub.s32 0, %v1638
  %v1640 = vrot.slane %v1366, %v1639
  %v1641 = vlaneseq
  %v1642 = vshrl.u32 %v1641, 7
  %v1643 = vsub.s32 0, %v1642
  %v1644 = vrot.slane %v1367, %v1643
  %v1645 = vlaneseq
  %v1646 = vshrl.u32 %v1645, 7
  %v1647 = vsub.s32 0, %v1646
  %v1648 = vrot.slane %v1368, %v1647
  %v1649 = vlaneseq
  %v1650 = vshrl.u32 %v1649, 7
  %v1651 = vsub.s32 0, %v1650
  %v1652 = vrot.slane %v1369, %v1651
  %v1653 = vlaneseq
  %v1654 = vshrl.u32 %v1653, 7
  %v1655 = vsub.s32 0, %v1654
  %v1656 = vrot.slane %v1370, %v1655
  %v1657 = vlaneseq
  %v1658 = vshrl.u32 %v1657, 7
  %v1659 = vsub.s32 0, %v1658
  %v1660 = vrot.slane %v1371, %v1659
  %v1661 = vlaneseq
  %v1662 = vshrl.u32 %v1661, 7
  %v1663 = vsub.s32 0, %v1662
  %v1664 = vrot.slane %v1372, %v1663
  %v1665 = vlaneseq
  %v1666 = vshrl.u32 %v1665, 7
  %v1667 = vsub.s32 0, %v1666
  %v1668 = vrot.slane %v1373, %v1667
  %v1669 = vlaneseq
  %v1670 = vshrl.u32 %v1669, 7
  %v1671 = vsub.s32 0, %v1670
  %v1672 = vrot.slane %v1374, %v1671
  %v1673 = vlaneseq
  %v1674 = vshrl.u32 %v1673, 7
  %v1675 = vsub.s32 0, %v1674
  %v1676 = vrot.slane %v1375, %v1675
  %v1677 = vlaneseq
  %v1678 = vshrl.u32 %v1677, 7
  %v1679 = vsub.s32 0, %v1678
  %v1680 = vrot.slane %v1376, %v1679
  %v1681 = vlaneseq
  %v1682 = vshrl.u32 %v1681, 7
  %v1683 = vsub.s32 0, %v1682
  %v1684 = vrot.slane %v1377, %v1683
  %v1685 = vlaneseq
  %v1686 = vshrl.u32 %v1685, 7
  %v1687 = vsub.s32 0, %v1686
  %v1688 = vrot.slane %v1378, %v1687
  %v1689 = vlaneseq
  %v1690 = vshrl.u32 %v1689, 7
  %v1691 = vsub.s32 0, %v1690
  %v1692 = vrot.slane %v1379, %v1691
  %v1693 = vlaneseq
  %v1694 = vshrl.u32 %v1693, 7
  %v1695 = vsub.s32 0, %v1694
  %v1696 = vrot.slane %v1380, %v1695
  %v1697 = vlaneseq
  %v1698 = vshrl.u32 %v1697, 7
  %v1699 = vsub.s32 0, %v1698
  %v1700 = vrot.slane %v1381, %v1699
  %v1701 = vlaneseq
  %v1702 = vshrl.u32 %v1701, 7
  %v1703 = vsub.s32 0, %v1702
  %v1704 = vrot.slane %v1382, %v1703
  %v1705 = vlaneseq
  %v1706 = vshrl.u32 %v1705, 7
  %v1707 = vsub.s32 0, %v1706
  %v1708 = vrot.slane %v1383, %v1707
  %v1709 = vlaneseq
  %v1710 = vshrl.u32 %v1709, 7
  %v1711 = vsub.s32 0, %v1710
  %v1712 = vrot.slane %v1384, %v1711
  %v1713 = vlaneseq
  %v1714 = vshrl.u32 %v1713, 7
  %v1715 = vsub.s32 0, %v1714
  %v1716 = vrot.slane %v1385, %v1715
  %v1717 = vlaneseq
  %v1718 = vshrl.u32 %v1717, 7
  %v1719 = vsub.s32 0, %v1718
  %v1720 = vrot.slane %v1386, %v1719
  %v1721 = vlaneseq
  %v1722 = vshrl.u32 %v1721, 7
  %v1723 = vsub.s32 0, %v1722
  %v1724 = vrot.slane %v1387, %v1723
  %v1725 = vlaneseq
  %v1726 = vshrl.u32 %v1725, 7
  %v1727 = vsub.s32 0, %v1726
  %v1728 = vrot.slane %v1388, %v1727
  %v1729 = vlaneseq
  %v1730 = vshrl.u32 %v1729, 7
  %v1731 = vsub.s32 0, %v1730
  %v1732 = vrot.slane %v1389, %v1731
  %v1733 = vlaneseq
  %v1734 = vshrl.u32 %v1733, 7
  %v1735 = vsub.s32 0, %v1734
  %v1736 = vrot.slane %v1390, %v1735
  %v1737 = vlaneseq
  %v1738 = vshrl.u32 %v1737, 7
  %v1739 = vsub.s32 0, %v1738
  %v1740 = vrot.slane %v1391, %v1739
  %v1741 = vlaneseq
  %v1742 = vshrl.u32 %v1741, 7
  %v1743 = vsub.s32 0, %v1742
  %v1744 = vrot.slane %v1392, %v1743
  %v1745 = vlaneseq
  %v1746 = vshrl.u32 %v1745, 7
  %v1747 = vsub.s32 0, %v1746
  %v1748 = vrot.slane %v1393, %v1747
  %v1749 = vlaneseq
  %v1750 = vshrl.u32 %v1749, 7
  %v1751 = vsub.s32 0, %v1750
  %v1752 = vrot.slane %v1394, %v1751
  %v1753 = vlaneseq
  %v1754 = vshrl.u32 %v1753, 7
  %v1755 = vsub.s32 0, %v1754
  %v1756 = vrot.slane %v1395, %v1755
  %v1757 = vlaneseq
  %v1758 = vshrl.u32 %v1757, 7
  %v1759 = vsub.s32 0, %v1758
  %v1760 = vrot.slane %v1396, %v1759
  %v1761 = vlaneseq
  %v1762 = vshrl.u32 %v1761, 7
  %v1763 = vsub.s32 0, %v1762
  %v1764 = vrot.slane %v1397, %v1763
  %v1765 = vlaneseq
  %v1766 = vshrl.u32 %v1765, 7
  %v1767 = vsub.s32 0, %v1766
  %v1768 = vrot.slane %v1398, %v1767
  %v1769 = vlaneseq
  %v1770 = vshrl.u32 %v1769, 7
  %v1771 = vsub.s32 0, %v1770
  %v1772 = vrot.slane %v1399, %v1771
  %v1773 = vlaneseq
  %v1774 = vshrl.u32 %v1773, 7
  %v1775 = vsub.s32 0, %v1774
  %v1776 = vrot.slane %v1400, %v1775
  %v1777 = vlaneseq
  %v1778 = vshrl.u32 %v1777, 7
  %v1779 = vsub.s32 0, %v1778
  %v1780 = vrot.slane %v1401, %v1779
  %v1781 = vlaneseq
  %v1782 = vshrl.u32 %v1781, 7
  %v1783 = vsub.s32 0, %v1782
  %v1784 = vrot.slane %v1402, %v1783
  %v1785 = vlaneseq
  %v1786 = vshrl.u32 %v1785, 7
  %v1787 = vsub.s32 0, %v1786
  %v1788 = vrot.slane %v1403, %v1787
  %v1789 = vlaneseq
  %v1790 = vshrl.u32 %v1789, 7
  %v1791 = vsub.s32 0, %v1790
  %v1792 = vrot.slane %v1404, %v1791
  %v1793 = vlaneseq
  %v1794 = vshrl.u32 %v1793, 7
  %v1795 = vsub.s32 0, %v1794
  %v1796 = vrot.slane %v1405, %v1795
  %v1797 = vlaneseq
  %v1798 = vshrl.u32 %v1797, 7
  %v1799 = vsub.s32 0, %v1798
  %v1800 = vrot.slane %v1406, %v1799
  %v1801 = vlaneseq
  %v1802 = vshrl.u32 %v1801, 7
  %v1803 = vsub.s32 0, %v1802
  %v1804 = vrot.slane %v1407, %v1803
  %v1805 = vlaneseq
  %v1806 = vshrl.u32 %v1805, 7
  %v1807 = vsub.s32 0, %v1806
  %v1808 = vrot.slane %v1408, %v1807
  %v1809 = vlaneseq
  %v1810 = vshrl.u32 %v1809, 7
  %v1811 = vsub.s32 0, %v1810
  %v1812 = vrot.slane %v1409, %v1811
  %v1813 = vlaneseq
  %v1814 = vshrl.u32 %v1813, 7
  %v1815 = vsub.s32 0, %v1814
  %v1816 = vrot.slane %v1410, %v1815
  %v1817 = vlaneseq
  %v1818 = vshrl.u32 %v1817, 7
  %v1819 = vsub.s32 0, %v1818
  %v1820 = vrot.slane %v1411, %v1819
  %v1821 = vlaneseq
  %v1822 = vshrl.u32 %v1821, 7
  %v1823 = vsub.s32 0, %v1822
  %v1824 = vrot.slane %v1412, %v1823
  %v1825 = vlaneseq
  %v1826 = vshrl.u32 %v1825, 7
  %v1827 = vsub.s32 0, %v1826
  %v1828 = vrot.slane %v1413, %v1827
  %v1829 = vlaneseq
  %v1830 = vshrl.u32 %v1829, 7
  %v1831 = vsub.s32 0, %v1830
  %v1832 = vrot.slane %v1414, %v1831
  %v1833 = vlaneseq
  %v1834 = vshrl.u32 %v1833, 7
  %v1835 = vsub.s32 0, %v1834
  %v1836 = vrot.slane %v1415, %v1835
  %v1837 = vlaneseq
  %v1838 = vshrl.u32 %v1837, 7
  %v1839 = vsub.s32 0, %v1838
  %v1840 = vrot.slane %v1416, %v1839
  %v1841 = vlaneseq
  %v1842 = vshrl.u32 %v1841, 7
  %v1843 = vsub.s32 0, %v1842
  %v1844 = vrot.slane %v1417, %v1843
  %v1845 = vlaneseq
  %v1846 = vshrl.u32 %v1845, 7
  %v1847 = vsub.s32 0, %v1846
  %v1848 = vrot.slane %v1418, %v1847
  %v1849 = vlaneseq
  %v1850 = vshrl.u32 %v1849, 7
  %v1851 = vsub.s32 0, %v1850
  %v1852 = vrot.slane %v1419, %v1851
  %v1853 = vlaneseq
  %v1854 = vshrl.u32 %v1853, 7
  %v1855 = vsub.s32 0, %v1854
  %v1856 = vrot.slane %v1420, %v1855
  %v1857 = vlaneseq
  %v1858 = vshrl.u32 %v1857, 7
  %v1859 = vsub.s32 0, %v1858
  %v1860 = vrot.slane %v1421, %v1859
  %v1861 = vlaneseq
  %v1862 = vshrl.u32 %v1861, 7
  %v1863 = vsub.s32 0, %v1862
  %v1864 = vrot.slane %v1422, %v1863
  %v1865 = vlaneseq
  %v1866 = vshrl.u32 %v1865, 7
  %v1867 = vsub.s32 0, %v1866
  %v1868 = vrot.slane %v1423, %v1867
  %v1869 = vlaneseq
  %v1870 = vshrl.u32 %v1869, 7
  %v1871 = vsub.s32 0, %v1870
  %v1872 = vrot.slane %v1424, %v1871
  %1938 = vset.pattern.permute.xlu0 0
  %1939 = vperm.xlu0 %1938, %v1425
  %v1940 = vpop.permute.xlu0 %1939
  %1943 = vset.pattern.permute.xlu0 0
  %1944 = vperm.xlu0 %1943, %v1426
  %v1945 = vpop.permute.xlu0 %1944
  %1948 = vset.pattern.permute.xlu0 0
  %1949 = vperm.xlu0 %1948, %v1427
  %v1950 = vpop.permute.xlu0 %1949
  %1953 = vset.pattern.permute.xlu0 0
  %1954 = vperm.xlu0 %1953, %v1428
  %v1955 = vpop.permute.xlu0 %1954
  %1958 = vset.pattern.permute.xlu0 0
  %1959 = vperm.xlu0 %1958, %v1429
  %v1960 = vpop.permute.xlu0 %1959
  %1963 = vset.pattern.permute.xlu0 0
  %1964 = vperm.xlu0 %1963, %v1430
  %v1965 = vpop.permute.xlu0 %1964
  %1968 = vset.pattern.permute.xlu0 0
  %1969 = vperm.xlu0 %1968, %v1431
  %v1970 = vpop.permute.xlu0 %1969
  %1973 = vset.pattern.permute.xlu0 0
  %1974 = vperm.xlu0 %1973, %v1432
  %v1975 = vpop.permute.xlu0 %1974
  %1978 = vset.pattern.permute.xlu0 0
  %1979 = vperm.xlu0 %1978, %v1433
  %v1980 = vpop.permute.xlu0 %1979
  %1983 = vset.pattern.permute.xlu0 0
  %1984 = vperm.xlu0 %1983, %v1434
  %v1985 = vpop.permute.xlu0 %1984
  %1988 = vset.pattern.permute.xlu0 0
  %1989 = vperm.xlu0 %1988, %v1435
  %v1990 = vpop.permute.xlu0 %1989
  %1993 = vset.pattern.permute.xlu0 0
  %1994 = vperm.xlu0 %1993, %v1436
  %v1995 = vpop.permute.xlu0 %1994
  %1998 = vset.pattern.permute.xlu0 0
  %1999 = vperm.xlu0 %1998, %v1437
  %v2000 = vpop.permute.xlu0 %1999
  %2003 = vset.pattern.permute.xlu0 0
  %2004 = vperm.xlu0 %2003, %v1438
  %v2005 = vpop.permute.xlu0 %2004
  %2008 = vset.pattern.permute.xlu0 0
  %2009 = vperm.xlu0 %2008, %v1439
  %v2010 = vpop.permute.xlu0 %2009
  %2013 = vset.pattern.permute.xlu0 0
  %2014 = vperm.xlu0 %2013, %v1440
  %v2015 = vpop.permute.xlu0 %2014
  %2018 = vset.pattern.permute.xlu0 0
  %2019 = vperm.xlu0 %2018, %v1441
  %v2020 = vpop.permute.xlu0 %2019
  %2023 = vset.pattern.permute.xlu0 0
  %2024 = vperm.xlu0 %2023, %v1442
  %v2025 = vpop.permute.xlu0 %2024
  %2028 = vset.pattern.permute.xlu0 0
  %2029 = vperm.xlu0 %2028, %v1443
  %v2030 = vpop.permute.xlu0 %2029
  %2033 = vset.pattern.permute.xlu0 0
  %2034 = vperm.xlu0 %2033, %v1444
  %v2035 = vpop.permute.xlu0 %2034
  %2038 = vset.pattern.permute.xlu0 0
  %2039 = vperm.xlu0 %2038, %v1445
  %v2040 = vpop.permute.xlu0 %2039
  %2043 = vset.pattern.permute.xlu0 0
  %2044 = vperm.xlu0 %2043, %v1446
  %v2045 = vpop.permute.xlu0 %2044
  %2048 = vset.pattern.permute.xlu0 0
  %2049 = vperm.xlu0 %2048, %v1447
  %v2050 = vpop.permute.xlu0 %2049
  %2053 = vset.pattern.permute.xlu0 0
  %2054 = vperm.xlu0 %2053, %v1448
  %v2055 = vpop.permute.xlu0 %2054
  %2058 = vset.pattern.permute.xlu0 0
  %2059 = vperm.xlu0 %2058, %v1449
  %v2060 = vpop.permute.xlu0 %2059
  %2063 = vset.pattern.permute.xlu0 0
  %2064 = vperm.xlu0 %2063, %v1450
  %v2065 = vpop.permute.xlu0 %2064
  %2068 = vset.pattern.permute.xlu0 0
  %2069 = vperm.xlu0 %2068, %v1451
  %v2070 = vpop.permute.xlu0 %2069
  %2073 = vset.pattern.permute.xlu0 0
  %2074 = vperm.xlu0 %2073, %v1452
  %v2075 = vpop.permute.xlu0 %2074
  %2078 = vset.pattern.permute.xlu0 0
  %2079 = vperm.xlu0 %2078, %v1453
  %v2080 = vpop.permute.xlu0 %2079
  %2083 = vset.pattern.permute.xlu0 0
  %2084 = vperm.xlu0 %2083, %v1454
  %v2085 = vpop.permute.xlu0 %2084
  %2088 = vset.pattern.permute.xlu0 0
  %2089 = vperm.xlu0 %2088, %v1455
  %v2090 = vpop.permute.xlu0 %2089
  %2093 = vset.pattern.permute.xlu0 0
  %2094 = vperm.xlu0 %2093, %v1456
  %v2095 = vpop.permute.xlu0 %2094
  %2098 = vset.pattern.permute.xlu0 0
  %2099 = vperm.xlu0 %2098, %v1457
  %v2100 = vpop.permute.xlu0 %2099
  %2103 = vset.pattern.permute.xlu0 0
  %2104 = vperm.xlu0 %2103, %v1458
  %v2105 = vpop.permute.xlu0 %2104
  %2108 = vset.pattern.permute.xlu0 0
  %2109 = vperm.xlu0 %2108, %v1459
  %v2110 = vpop.permute.xlu0 %2109
  %2113 = vset.pattern.permute.xlu0 0
  %2114 = vperm.xlu0 %2113, %v1460
  %v2115 = vpop.permute.xlu0 %2114
  %2118 = vset.pattern.permute.xlu0 0
  %2119 = vperm.xlu0 %2118, %v1461
  %v2120 = vpop.permute.xlu0 %2119
  %2123 = vset.pattern.permute.xlu0 0
  %2124 = vperm.xlu0 %2123, %v1462
  %v2125 = vpop.permute.xlu0 %2124
  %2128 = vset.pattern.permute.xlu0 0
  %2129 = vperm.xlu0 %2128, %v1463
  %v2130 = vpop.permute.xlu0 %2129
  %2133 = vset.pattern.permute.xlu0 0
  %2134 = vperm.xlu0 %2133, %v1464
  %v2135 = vpop.permute.xlu0 %2134
  %2138 = vset.pattern.permute.xlu0 0
  %2139 = vperm.xlu0 %2138, %v1465
  %v2140 = vpop.permute.xlu0 %2139
  %2143 = vset.pattern.permute.xlu0 0
  %2144 = vperm.xlu0 %2143, %v1466
  %v2145 = vpop.permute.xlu0 %2144
  %2148 = vset.pattern.permute.xlu0 0
  %2149 = vperm.xlu0 %2148, %v1467
  %v2150 = vpop.permute.xlu0 %2149
  %2153 = vset.pattern.permute.xlu0 0
  %2154 = vperm.xlu0 %2153, %v1468
  %v2155 = vpop.permute.xlu0 %2154
  %2158 = vset.pattern.permute.xlu0 0
  %2159 = vperm.xlu0 %2158, %v1469
  %v2160 = vpop.permute.xlu0 %2159
  %2163 = vset.pattern.permute.xlu0 0
  %2164 = vperm.xlu0 %2163, %v1470
  %v2165 = vpop.permute.xlu0 %2164
  %2168 = vset.pattern.permute.xlu0 0
  %2169 = vperm.xlu0 %2168, %v1471
  %v2170 = vpop.permute.xlu0 %2169
  %2173 = vset.pattern.permute.xlu0 0
  %2174 = vperm.xlu0 %2173, %v1472
  %v2175 = vpop.permute.xlu0 %2174
  %2178 = vset.pattern.permute.xlu0 0
  %2179 = vperm.xlu0 %2178, %v1473
  %v2180 = vpop.permute.xlu0 %2179
  %2183 = vset.pattern.permute.xlu0 0
  %2184 = vperm.xlu0 %2183, %v1474
  %v2185 = vpop.permute.xlu0 %2184
  %2188 = vset.pattern.permute.xlu0 0
  %2189 = vperm.xlu0 %2188, %v1475
  %v2190 = vpop.permute.xlu0 %2189
  %2193 = vset.pattern.permute.xlu0 0
  %2194 = vperm.xlu0 %2193, %v1476
  %v2195 = vpop.permute.xlu0 %2194
  %2198 = vset.pattern.permute.xlu0 0
  %2199 = vperm.xlu0 %2198, %v1477
  %v2200 = vpop.permute.xlu0 %2199
  %2203 = vset.pattern.permute.xlu0 0
  %2204 = vperm.xlu0 %2203, %v1478
  %v2205 = vpop.permute.xlu0 %2204
  %2208 = vset.pattern.permute.xlu0 0
  %2209 = vperm.xlu0 %2208, %v1479
  %v2210 = vpop.permute.xlu0 %2209
  %2213 = vset.pattern.permute.xlu0 0
  %2214 = vperm.xlu0 %2213, %v1480
  %v2215 = vpop.permute.xlu0 %2214
  %2218 = vset.pattern.permute.xlu0 0
  %2219 = vperm.xlu0 %2218, %v1481
  %v2220 = vpop.permute.xlu0 %2219
  %2223 = vset.pattern.permute.xlu0 0
  %2224 = vperm.xlu0 %2223, %v1482
  %v2225 = vpop.permute.xlu0 %2224
  %2228 = vset.pattern.permute.xlu0 0
  %2229 = vperm.xlu0 %2228, %v1483
  %v2230 = vpop.permute.xlu0 %2229
  %2233 = vset.pattern.permute.xlu0 0
  %2234 = vperm.xlu0 %2233, %v1484
  %v2235 = vpop.permute.xlu0 %2234
  %2238 = vset.pattern.permute.xlu0 0
  %2239 = vperm.xlu0 %2238, %v1485
  %v2240 = vpop.permute.xlu0 %2239
  %2243 = vset.pattern.permute.xlu0 0
  %2244 = vperm.xlu0 %2243, %v1486
  %v2245 = vpop.permute.xlu0 %2244
  %2248 = vset.pattern.permute.xlu0 0
  %2249 = vperm.xlu0 %2248, %v1487
  %v2250 = vpop.permute.xlu0 %2249
  %2253 = vset.pattern.permute.xlu0 0
  %2254 = vperm.xlu0 %2253, %v1488
  %v2255 = vpop.permute.xlu0 %2254
  %2258 = vset.pattern.permute.xlu0 0
  %2259 = vperm.xlu0 %2258, %v1489
  %v2260 = vpop.permute.xlu0 %2259
  %2263 = vset.pattern.permute.xlu0 0
  %2264 = vperm.xlu0 %2263, %v1490
  %v2265 = vpop.permute.xlu0 %2264
  %2268 = vset.pattern.permute.xlu0 0
  %2269 = vperm.xlu0 %2268, %v1491
  %v2270 = vpop.permute.xlu0 %2269
  %2273 = vset.pattern.permute.xlu0 0
  %2274 = vperm.xlu0 %2273, %v1492
  %v2275 = vpop.permute.xlu0 %2274
  %2278 = vset.pattern.permute.xlu0 0
  %2279 = vperm.xlu0 %2278, %v1493
  %v2280 = vpop.permute.xlu0 %2279
  %2283 = vset.pattern.permute.xlu0 0
  %2284 = vperm.xlu0 %2283, %v1494
  %v2285 = vpop.permute.xlu0 %2284
  %2288 = vset.pattern.permute.xlu0 0
  %2289 = vperm.xlu0 %2288, %v1495
  %v2290 = vpop.permute.xlu0 %2289
  %2293 = vset.pattern.permute.xlu0 0
  %2294 = vperm.xlu0 %2293, %v1496
  %v2295 = vpop.permute.xlu0 %2294
  %2298 = vset.pattern.permute.xlu0 0
  %2299 = vperm.xlu0 %2298, %v1497
  %v2300 = vpop.permute.xlu0 %2299
  %2303 = vset.pattern.permute.xlu0 0
  %2304 = vperm.xlu0 %2303, %v1498
  %v2305 = vpop.permute.xlu0 %2304
  %2308 = vset.pattern.permute.xlu0 0
  %2309 = vperm.xlu0 %2308, %v1499
  %v2310 = vpop.permute.xlu0 %2309
  %2313 = vset.pattern.permute.xlu0 0
  %2314 = vperm.xlu0 %2313, %v1500
  %v2315 = vpop.permute.xlu0 %2314
  %2318 = vset.pattern.permute.xlu0 0
  %2319 = vperm.xlu0 %2318, %v1501
  %v2320 = vpop.permute.xlu0 %2319
  %2323 = vset.pattern.permute.xlu0 0
  %2324 = vperm.xlu0 %2323, %v1502
  %v2325 = vpop.permute.xlu0 %2324
  %2328 = vset.pattern.permute.xlu0 0
  %2329 = vperm.xlu0 %2328, %v1503
  %v2330 = vpop.permute.xlu0 %2329
  %2333 = vset.pattern.permute.xlu0 0
  %2334 = vperm.xlu0 %2333, %v1504
  %v2335 = vpop.permute.xlu0 %2334
  %2338 = vset.pattern.permute.xlu0 0
  %2339 = vperm.xlu0 %2338, %v1505
  %v2340 = vpop.permute.xlu0 %2339
  %2343 = vset.pattern.permute.xlu0 0
  %2344 = vperm.xlu0 %2343, %v1506
  %v2345 = vpop.permute.xlu0 %2344
  %2348 = vset.pattern.permute.xlu0 0
  %2349 = vperm.xlu0 %2348, %v1507
  %v2350 = vpop.permute.xlu0 %2349
  %2353 = vset.pattern.permute.xlu0 0
  %2354 = vperm.xlu0 %2353, %v1508
  %v2355 = vpop.permute.xlu0 %2354
  %2358 = vset.pattern.permute.xlu0 0
  %2359 = vperm.xlu0 %2358, %v1509
  %v2360 = vpop.permute.xlu0 %2359
  %2363 = vset.pattern.permute.xlu0 0
  %2364 = vperm.xlu0 %2363, %v1510
  %v2365 = vpop.permute.xlu0 %2364
  %2368 = vset.pattern.permute.xlu0 0
  %2369 = vperm.xlu0 %2368, %v1511
  %v2370 = vpop.permute.xlu0 %2369
  %2373 = vset.pattern.permute.xlu0 0
  %2374 = vperm.xlu0 %2373, %v1512
  %v2375 = vpop.permute.xlu0 %2374
  %2378 = vset.pattern.permute.xlu0 0
  %2379 = vperm.xlu0 %2378, %v1513
  %v2380 = vpop.permute.xlu0 %2379
  %2383 = vset.pattern.permute.xlu0 0
  %2384 = vperm.xlu0 %2383, %v1514
  %v2385 = vpop.permute.xlu0 %2384
  %2388 = vset.pattern.permute.xlu0 0
  %2389 = vperm.xlu0 %2388, %v1515
  %v2390 = vpop.permute.xlu0 %2389
  %2393 = vset.pattern.permute.xlu0 0
  %2394 = vperm.xlu0 %2393, %v1516
  %v2395 = vpop.permute.xlu0 %2394
  %2398 = vset.pattern.permute.xlu0 0
  %2399 = vperm.xlu0 %2398, %v1517
  %v2400 = vpop.permute.xlu0 %2399
  %2403 = vset.pattern.permute.xlu0 0
  %2404 = vperm.xlu0 %2403, %v1518
  %v2405 = vpop.permute.xlu0 %2404
  %2408 = vset.pattern.permute.xlu0 0
  %2409 = vperm.xlu0 %2408, %v1519
  %v2410 = vpop.permute.xlu0 %2409
  %2413 = vset.pattern.permute.xlu0 0
  %2414 = vperm.xlu0 %2413, %v1520
  %v2415 = vpop.permute.xlu0 %2414
  %2418 = vset.pattern.permute.xlu0 0
  %2419 = vperm.xlu0 %2418, %v1521
  %v2420 = vpop.permute.xlu0 %2419
  %2423 = vset.pattern.permute.xlu0 0
  %2424 = vperm.xlu0 %2423, %v1522
  %v2425 = vpop.permute.xlu0 %2424
  %2428 = vset.pattern.permute.xlu0 0
  %2429 = vperm.xlu0 %2428, %v1523
  %v2430 = vpop.permute.xlu0 %2429
  %2433 = vset.pattern.permute.xlu0 0
  %2434 = vperm.xlu0 %2433, %v1524
  %v2435 = vpop.permute.xlu0 %2434
  %2438 = vset.pattern.permute.xlu0 0
  %2439 = vperm.xlu0 %2438, %v1525
  %v2440 = vpop.permute.xlu0 %2439
  %2443 = vset.pattern.permute.xlu0 0
  %2444 = vperm.xlu0 %2443, %v1526
  %v2445 = vpop.permute.xlu0 %2444
  %2448 = vset.pattern.permute.xlu0 0
  %2449 = vperm.xlu0 %2448, %v1527
  %v2450 = vpop.permute.xlu0 %2449
  %2453 = vset.pattern.permute.xlu0 0
  %2454 = vperm.xlu0 %2453, %v1528
  %v2455 = vpop.permute.xlu0 %2454
  %2458 = vset.pattern.permute.xlu0 0
  %2459 = vperm.xlu0 %2458, %v1529
  %v2460 = vpop.permute.xlu0 %2459
  %2463 = vset.pattern.permute.xlu0 0
  %2464 = vperm.xlu0 %2463, %v1530
  %v2465 = vpop.permute.xlu0 %2464
  %2468 = vset.pattern.permute.xlu0 0
  %2469 = vperm.xlu0 %2468, %v1531
  %v2470 = vpop.permute.xlu0 %2469
  %2473 = vset.pattern.permute.xlu0 0
  %2474 = vperm.xlu0 %2473, %v1532
  %v2475 = vpop.permute.xlu0 %2474
  %2478 = vset.pattern.permute.xlu0 0
  %2479 = vperm.xlu0 %2478, %v1533
  %v2480 = vpop.permute.xlu0 %2479
  %2483 = vset.pattern.permute.xlu0 0
  %2484 = vperm.xlu0 %2483, %v1534
  %v2485 = vpop.permute.xlu0 %2484
  %2488 = vset.pattern.permute.xlu0 0
  %2489 = vperm.xlu0 %2488, %v1535
  %v2490 = vpop.permute.xlu0 %2489
  %2493 = vset.pattern.permute.xlu0 0
  %2494 = vperm.xlu0 %2493, %v1536
  %v2495 = vpop.permute.xlu0 %2494
  %2498 = vset.pattern.permute.xlu0 0
  %2499 = vperm.xlu0 %2498, %v1537
  %v2500 = vpop.permute.xlu0 %2499
  %2503 = vset.pattern.permute.xlu0 0
  %2504 = vperm.xlu0 %2503, %v1538
  %v2505 = vpop.permute.xlu0 %2504
  %2508 = vset.pattern.permute.xlu0 0
  %2509 = vperm.xlu0 %2508, %v1539
  %v2510 = vpop.permute.xlu0 %2509
  %2513 = vset.pattern.permute.xlu0 0
  %2514 = vperm.xlu0 %2513, %v1540
  %v2515 = vpop.permute.xlu0 %2514
  %2518 = vset.pattern.permute.xlu0 0
  %2519 = vperm.xlu0 %2518, %v1541
  %v2520 = vpop.permute.xlu0 %2519
  %2523 = vset.pattern.permute.xlu0 0
  %2524 = vperm.xlu0 %2523, %v1542
  %v2525 = vpop.permute.xlu0 %2524
  %2528 = vset.pattern.permute.xlu0 0
  %2529 = vperm.xlu0 %2528, %v1543
  %v2530 = vpop.permute.xlu0 %2529
  %2533 = vset.pattern.permute.xlu0 0
  %2534 = vperm.xlu0 %2533, %v1544
  %v2535 = vpop.permute.xlu0 %2534
  %2538 = vset.pattern.permute.xlu0 0
  %2539 = vperm.xlu0 %2538, %v1545
  %v2540 = vpop.permute.xlu0 %2539
  %2543 = vset.pattern.permute.xlu0 0
  %2544 = vperm.xlu0 %2543, %v1546
  %v2545 = vpop.permute.xlu0 %2544
  %2548 = vset.pattern.permute.xlu0 0
  %2549 = vperm.xlu0 %2548, %v1547
  %v2550 = vpop.permute.xlu0 %2549
  %2553 = vset.pattern.permute.xlu0 0
  %2554 = vperm.xlu0 %2553, %v1548
  %v2555 = vpop.permute.xlu0 %2554
  %2558 = vset.pattern.permute.xlu0 0
  %2559 = vperm.xlu0 %2558, %v1549
  %v2560 = vpop.permute.xlu0 %2559
  %2563 = vset.pattern.permute.xlu0 0
  %2564 = vperm.xlu0 %2563, %v1550
  %v2565 = vpop.permute.xlu0 %2564
  %2568 = vset.pattern.permute.xlu0 0
  %2569 = vperm.xlu0 %2568, %v1551
  %v2570 = vpop.permute.xlu0 %2569
  %2573 = vset.pattern.permute.xlu0 0
  %2574 = vperm.xlu0 %2573, %v1552
  %v2575 = vpop.permute.xlu0 %2574
  %v2577 = vmul.f32 %v1620, %v1940
  %v2578 = vmul.f32 %v1620, %v1945
  %v2579 = vmul.f32 %v1624, %v1950
  %v2580 = vmul.f32 %v1624, %v1955
  %v2581 = vmul.f32 %v1628, %v1960
  %v2582 = vmul.f32 %v1628, %v1965
  %v2583 = vmul.f32 %v1632, %v1970
  %v2584 = vmul.f32 %v1632, %v1975
  %v2585 = vmul.f32 %v1636, %v1980
  %v2586 = vmul.f32 %v1636, %v1985
  %v2587 = vmul.f32 %v1640, %v1990
  %v2588 = vmul.f32 %v1640, %v1995
  %v2589 = vmul.f32 %v1644, %v2000
  %v2590 = vmul.f32 %v1644, %v2005
  %v2591 = vmul.f32 %v1648, %v2010
  %v2592 = vmul.f32 %v1648, %v2015
  %v2593 = vmul.f32 %v1652, %v2020
  %v2594 = vmul.f32 %v1652, %v2025
  %v2595 = vmul.f32 %v1656, %v2030
  %v2596 = vmul.f32 %v1656, %v2035
  %v2597 = vmul.f32 %v1660, %v2040
  %v2598 = vmul.f32 %v1660, %v2045
  %v2599 = vmul.f32 %v1664, %v2050
  %v2600 = vmul.f32 %v1664, %v2055
  %v2601 = vmul.f32 %v1668, %v2060
  %v2602 = vmul.f32 %v1668, %v2065
  %v2603 = vmul.f32 %v1672, %v2070
  %v2604 = vmul.f32 %v1672, %v2075
  %v2605 = vmul.f32 %v1676, %v2080
  %v2606 = vmul.f32 %v1676, %v2085
  %v2607 = vmul.f32 %v1680, %v2090
  %v2608 = vmul.f32 %v1680, %v2095
  %v2609 = vmul.f32 %v1684, %v2100
  %v2610 = vmul.f32 %v1684, %v2105
  %v2611 = vmul.f32 %v1688, %v2110
  %v2612 = vmul.f32 %v1688, %v2115
  %v2613 = vmul.f32 %v1692, %v2120
  %v2614 = vmul.f32 %v1692, %v2125
  %v2615 = vmul.f32 %v1696, %v2130
  %v2616 = vmul.f32 %v1696, %v2135
  %v2617 = vmul.f32 %v1700, %v2140
  %v2618 = vmul.f32 %v1700, %v2145
  %v2619 = vmul.f32 %v1704, %v2150
  %v2620 = vmul.f32 %v1704, %v2155
  %v2621 = vmul.f32 %v1708, %v2160
  %v2622 = vmul.f32 %v1708, %v2165
  %v2623 = vmul.f32 %v1712, %v2170
  %v2624 = vmul.f32 %v1712, %v2175
  %v2625 = vmul.f32 %v1716, %v2180
  %v2626 = vmul.f32 %v1716, %v2185
  %v2627 = vmul.f32 %v1720, %v2190
  %v2628 = vmul.f32 %v1720, %v2195
  %v2629 = vmul.f32 %v1724, %v2200
  %v2630 = vmul.f32 %v1724, %v2205
  %v2631 = vmul.f32 %v1728, %v2210
  %v2632 = vmul.f32 %v1728, %v2215
  %v2633 = vmul.f32 %v1732, %v2220
  %v2634 = vmul.f32 %v1732, %v2225
  %v2635 = vmul.f32 %v1736, %v2230
  %v2636 = vmul.f32 %v1736, %v2235
  %v2637 = vmul.f32 %v1740, %v2240
  %v2638 = vmul.f32 %v1740, %v2245
  %v2639 = vmul.f32 %v1744, %v2250
  %v2640 = vmul.f32 %v1744, %v2255
  %v2641 = vmul.f32 %v1748, %v2260
  %v2642 = vmul.f32 %v1748, %v2265
  %v2643 = vmul.f32 %v1752, %v2270
  %v2644 = vmul.f32 %v1752, %v2275
  %v2645 = vmul.f32 %v1756, %v2280
  %v2646 = vmul.f32 %v1756, %v2285
  %v2647 = vmul.f32 %v1760, %v2290
  %v2648 = vmul.f32 %v1760, %v2295
  %v2649 = vmul.f32 %v1764, %v2300
  %v2650 = vmul.f32 %v1764, %v2305
  %v2651 = vmul.f32 %v1768, %v2310
  %v2652 = vmul.f32 %v1768, %v2315
  %v2653 = vmul.f32 %v1772, %v2320
  %v2654 = vmul.f32 %v1772, %v2325
  %v2655 = vmul.f32 %v1776, %v2330
  %v2656 = vmul.f32 %v1776, %v2335
  %v2657 = vmul.f32 %v1780, %v2340
  %v2658 = vmul.f32 %v1780, %v2345
  %v2659 = vmul.f32 %v1784, %v2350
  %v2660 = vmul.f32 %v1784, %v2355
  %v2661 = vmul.f32 %v1788, %v2360
  %v2662 = vmul.f32 %v1788, %v2365
  %v2663 = vmul.f32 %v1792, %v2370
  %v2664 = vmul.f32 %v1792, %v2375
  %v2665 = vmul.f32 %v1796, %v2380
  %v2666 = vmul.f32 %v1796, %v2385
  %v2667 = vmul.f32 %v1800, %v2390
  %v2668 = vmul.f32 %v1800, %v2395
  %v2669 = vmul.f32 %v1804, %v2400
  %v2670 = vmul.f32 %v1804, %v2405
  %v2671 = vmul.f32 %v1808, %v2410
  %v2672 = vmul.f32 %v1808, %v2415
  %v2673 = vmul.f32 %v1812, %v2420
  %v2674 = vmul.f32 %v1812, %v2425
  %v2675 = vmul.f32 %v1816, %v2430
  %v2676 = vmul.f32 %v1816, %v2435
  %v2677 = vmul.f32 %v1820, %v2440
  %v2678 = vmul.f32 %v1820, %v2445
  %v2679 = vmul.f32 %v1824, %v2450
  %v2680 = vmul.f32 %v1824, %v2455
  %v2681 = vmul.f32 %v1828, %v2460
  %v2682 = vmul.f32 %v1828, %v2465
  %v2683 = vmul.f32 %v1832, %v2470
  %v2684 = vmul.f32 %v1832, %v2475
  %v2685 = vmul.f32 %v1836, %v2480
  %v2686 = vmul.f32 %v1836, %v2485
  %v2687 = vmul.f32 %v1840, %v2490
  %v2688 = vmul.f32 %v1840, %v2495
  %v2689 = vmul.f32 %v1844, %v2500
  %v2690 = vmul.f32 %v1844, %v2505
  %v2691 = vmul.f32 %v1848, %v2510
  %v2692 = vmul.f32 %v1848, %v2515
  %v2693 = vmul.f32 %v1852, %v2520
  %v2694 = vmul.f32 %v1852, %v2525
  %v2695 = vmul.f32 %v1856, %v2530
  %v2696 = vmul.f32 %v1856, %v2535
  %v2697 = vmul.f32 %v1860, %v2540
  %v2698 = vmul.f32 %v1860, %v2545
  %v2699 = vmul.f32 %v1864, %v2550
  %v2700 = vmul.f32 %v1864, %v2555
  %v2701 = vmul.f32 %v1868, %v2560
  %v2702 = vmul.f32 %v1868, %v2565
  %v2703 = vmul.f32 %v1872, %v2570
  %v2704 = vmul.f32 %v1872, %v2575
  %v2705 = vadd.f32 %v1233, %v2577
  %v2706 = vadd.f32 %v1234, %v2578
  %v2707 = vadd.f32 %v1235, %v2579
  %v2708 = vadd.f32 %v1236, %v2580
  %v2709 = vadd.f32 %v1237, %v2581
  %v2710 = vadd.f32 %v1238, %v2582
  %v2711 = vadd.f32 %v1239, %v2583
  %v2712 = vadd.f32 %v1240, %v2584
  %v2713 = vadd.f32 %v1241, %v2585
  %v2714 = vadd.f32 %v1242, %v2586
  %v2715 = vadd.f32 %v1243, %v2587
  %v2716 = vadd.f32 %v1244, %v2588
  %v2717 = vadd.f32 %v1245, %v2589
  %v2718 = vadd.f32 %v1246, %v2590
  %v2719 = vadd.f32 %v1247, %v2591
  %v2720 = vadd.f32 %v1248, %v2592
  %v2721 = vadd.f32 %v1249, %v2593
  %v2722 = vadd.f32 %v1250, %v2594
  %v2723 = vadd.f32 %v1251, %v2595
  %v2724 = vadd.f32 %v1252, %v2596
  %v2725 = vadd.f32 %v1253, %v2597
  %v2726 = vadd.f32 %v1254, %v2598
  %v2727 = vadd.f32 %v1255, %v2599
  %v2728 = vadd.f32 %v1256, %v2600
  %v2729 = vadd.f32 %v1257, %v2601
  %v2730 = vadd.f32 %v1258, %v2602
  %v2731 = vadd.f32 %v1259, %v2603
  %v2732 = vadd.f32 %v1260, %v2604
  %v2733 = vadd.f32 %v1261, %v2605
  %v2734 = vadd.f32 %v1262, %v2606
  %v2735 = vadd.f32 %v1263, %v2607
  %v2736 = vadd.f32 %v1264, %v2608
  %v2737 = vadd.f32 %v1265, %v2609
  %v2738 = vadd.f32 %v1266, %v2610
  %v2739 = vadd.f32 %v1267, %v2611
  %v2740 = vadd.f32 %v1268, %v2612
  %v2741 = vadd.f32 %v1269, %v2613
  %v2742 = vadd.f32 %v1270, %v2614
  %v2743 = vadd.f32 %v1271, %v2615
  %v2744 = vadd.f32 %v1272, %v2616
  %v2745 = vadd.f32 %v1273, %v2617
  %v2746 = vadd.f32 %v1274, %v2618
  %v2747 = vadd.f32 %v1275, %v2619
  %v2748 = vadd.f32 %v1276, %v2620
  %v2749 = vadd.f32 %v1277, %v2621
  %v2750 = vadd.f32 %v1278, %v2622
  %v2751 = vadd.f32 %v1279, %v2623
  %v2752 = vadd.f32 %v1280, %v2624
  %v2753 = vadd.f32 %v1281, %v2625
  %v2754 = vadd.f32 %v1282, %v2626
  %v2755 = vadd.f32 %v1283, %v2627
  %v2756 = vadd.f32 %v1284, %v2628
  %v2757 = vadd.f32 %v1285, %v2629
  %v2758 = vadd.f32 %v1286, %v2630
  %v2759 = vadd.f32 %v1287, %v2631
  %v2760 = vadd.f32 %v1288, %v2632
  %v2761 = vadd.f32 %v1289, %v2633
  %v2762 = vadd.f32 %v1290, %v2634
  %v2763 = vadd.f32 %v1291, %v2635
  %v2764 = vadd.f32 %v1292, %v2636
  %v2765 = vadd.f32 %v1293, %v2637
  %v2766 = vadd.f32 %v1294, %v2638
  %v2767 = vadd.f32 %v1295, %v2639
  %v2768 = vadd.f32 %v1296, %v2640
  %v2769 = vadd.f32 %v1297, %v2641
  %v2770 = vadd.f32 %v1298, %v2642
  %v2771 = vadd.f32 %v1299, %v2643
  %v2772 = vadd.f32 %v1300, %v2644
  %v2773 = vadd.f32 %v1301, %v2645
  %v2774 = vadd.f32 %v1302, %v2646
  %v2775 = vadd.f32 %v1303, %v2647
  %v2776 = vadd.f32 %v1304, %v2648
  %v2777 = vadd.f32 %v1305, %v2649
  %v2778 = vadd.f32 %v1306, %v2650
  %v2779 = vadd.f32 %v1307, %v2651
  %v2780 = vadd.f32 %v1308, %v2652
  %v2781 = vadd.f32 %v1309, %v2653
  %v2782 = vadd.f32 %v1310, %v2654
  %v2783 = vadd.f32 %v1311, %v2655
  %v2784 = vadd.f32 %v1312, %v2656
  %v2785 = vadd.f32 %v1313, %v2657
  %v2786 = vadd.f32 %v1314, %v2658
  %v2787 = vadd.f32 %v1315, %v2659
  %v2788 = vadd.f32 %v1316, %v2660
  %v2789 = vadd.f32 %v1317, %v2661
  %v2790 = vadd.f32 %v1318, %v2662
  %v2791 = vadd.f32 %v1319, %v2663
  %v2792 = vadd.f32 %v1320, %v2664
  %v2793 = vadd.f32 %v1321, %v2665
  %v2794 = vadd.f32 %v1322, %v2666
  %v2795 = vadd.f32 %v1323, %v2667
  %v2796 = vadd.f32 %v1324, %v2668
  %v2797 = vadd.f32 %v1325, %v2669
  %v2798 = vadd.f32 %v1326, %v2670
  %v2799 = vadd.f32 %v1327, %v2671
  %v2800 = vadd.f32 %v1328, %v2672
  %v2801 = vadd.f32 %v1329, %v2673
  %v2802 = vadd.f32 %v1330, %v2674
  %v2803 = vadd.f32 %v1331, %v2675
  %v2804 = vadd.f32 %v1332, %v2676
  %v2805 = vadd.f32 %v1333, %v2677
  %v2806 = vadd.f32 %v1334, %v2678
  %v2807 = vadd.f32 %v1335, %v2679
  %v2808 = vadd.f32 %v1336, %v2680
  %v2809 = vadd.f32 %v1337, %v2681
  %v2810 = vadd.f32 %v1338, %v2682
  %v2811 = vadd.f32 %v1339, %v2683
  %v2812 = vadd.f32 %v1340, %v2684
  %v2813 = vadd.f32 %v1341, %v2685
  %v2814 = vadd.f32 %v1342, %v2686
  %v2815 = vadd.f32 %v1343, %v2687
  %v2816 = vadd.f32 %v1344, %v2688
  %v2817 = vadd.f32 %v1345, %v2689
  %v2818 = vadd.f32 %v1346, %v2690
  %v2819 = vadd.f32 %v1347, %v2691
  %v2820 = vadd.f32 %v1348, %v2692
  %v2821 = vadd.f32 %v1349, %v2693
  %v2822 = vadd.f32 %v1350, %v2694
  %v2823 = vadd.f32 %v1351, %v2695
  %v2824 = vadd.f32 %v1352, %v2696
  %v2825 = vadd.f32 %v1353, %v2697
  %v2826 = vadd.f32 %v1354, %v2698
  %v2827 = vadd.f32 %v1355, %v2699
  %v2828 = vadd.f32 %v1356, %v2700
  %v2829 = vadd.f32 %v1357, %v2701
  %v2830 = vadd.f32 %v1358, %v2702
  %v2831 = vadd.f32 %v1359, %v2703
  %v2832 = vadd.f32 %v1360, %v2704
  %vm2833 = vcmask 130048
  %2834 = vst.msk [vmem:[%s4] sm:$0xff] %vm2833, %v2705
  %2835 = vst.msk [vmem:[%s4 + $0x8] sm:$0xff] %vm2833, %v2706
  %2836 = vst.msk [vmem:[%s4 + $0x10] sm:$0xff] %vm2833, %v2707
  %2837 = vst.msk [vmem:[%s4 + $0x18] sm:$0xff] %vm2833, %v2708
  %2838 = vst.msk [vmem:[%s4 + $0x20] sm:$0xff] %vm2833, %v2709
  %2839 = vst.msk [vmem:[%s4 + $0x28] sm:$0xff] %vm2833, %v2710
  %2840 = vst.msk [vmem:[%s4 + $0x30] sm:$0xff] %vm2833, %v2711
  %2841 = vst.msk [vmem:[%s4 + $0x38] sm:$0xff] %vm2833, %v2712
  %2842 = vst.msk [vmem:[%s4 + $0x40] sm:$0xff] %vm2833, %v2713
  %2843 = vst.msk [vmem:[%s4 + $0x48] sm:$0xff] %vm2833, %v2714
  %2844 = vst.msk [vmem:[%s4 + $0x50] sm:$0xff] %vm2833, %v2715
  %2845 = vst.msk [vmem:[%s4 + $0x58] sm:$0xff] %vm2833, %v2716
  %2846 = vst.msk [vmem:[%s4 + $0x60] sm:$0xff] %vm2833, %v2717
  %2847 = vst.msk [vmem:[%s4 + $0x68] sm:$0xff] %vm2833, %v2718
  %2848 = vst.msk [vmem:[%s4 + $0x70] sm:$0xff] %vm2833, %v2719
  %2849 = vst.msk [vmem:[%s4 + $0x78] sm:$0xff] %vm2833, %v2720
  %2850 = vst.msk [vmem:[%s4 + $0x80] sm:$0xff] %vm2833, %v2721
  %2851 = vst.msk [vmem:[%s4 + $0x88] sm:$0xff] %vm2833, %v2722
  %2852 = vst.msk [vmem:[%s4 + $0x90] sm:$0xff] %vm2833, %v2723
  %2853 = vst.msk [vmem:[%s4 + $0x98] sm:$0xff] %vm2833, %v2724
  %2854 = vst.msk [vmem:[%s4 + $0xa0] sm:$0xff] %vm2833, %v2725
  %2855 = vst.msk [vmem:[%s4 + $0xa8] sm:$0xff] %vm2833, %v2726
  %2856 = vst.msk [vmem:[%s4 + $0xb0] sm:$0xff] %vm2833, %v2727
  %2857 = vst.msk [vmem:[%s4 + $0xb8] sm:$0xff] %vm2833, %v2728
  %2858 = vst.msk [vmem:[%s4 + $0xc0] sm:$0xff] %vm2833, %v2729
  %2859 = vst.msk [vmem:[%s4 + $0xc8] sm:$0xff] %vm2833, %v2730
  %2860 = vst.msk [vmem:[%s4 + $0xd0] sm:$0xff] %vm2833, %v2731
  %2861 = vst.msk [vmem:[%s4 + $0xd8] sm:$0xff] %vm2833, %v2732
  %2862 = vst.msk [vmem:[%s4 + $0xe0] sm:$0xff] %vm2833, %v2733
  %2863 = vst.msk [vmem:[%s4 + $0xe8] sm:$0xff] %vm2833, %v2734
  %2864 = vst.msk [vmem:[%s4 + $0xf0] sm:$0xff] %vm2833, %v2735
  %2865 = vst.msk [vmem:[%s4 + $0xf8] sm:$0xff] %vm2833, %v2736
  %2866 = vst.msk [vmem:[%s4 + $0x100] sm:$0xff] %vm2833, %v2737
  %2867 = vst.msk [vmem:[%s4 + $0x108] sm:$0xff] %vm2833, %v2738
  %2868 = vst.msk [vmem:[%s4 + $0x110] sm:$0xff] %vm2833, %v2739
  %2869 = vst.msk [vmem:[%s4 + $0x118] sm:$0xff] %vm2833, %v2740
  %2870 = vst.msk [vmem:[%s4 + $0x120] sm:$0xff] %vm2833, %v2741
  %2871 = vst.msk [vmem:[%s4 + $0x128] sm:$0xff] %vm2833, %v2742
  %2872 = vst.msk [vmem:[%s4 + $0x130] sm:$0xff] %vm2833, %v2743
  %2873 = vst.msk [vmem:[%s4 + $0x138] sm:$0xff] %vm2833, %v2744
  %2874 = vst.msk [vmem:[%s4 + $0x140] sm:$0xff] %vm2833, %v2745
  %2875 = vst.msk [vmem:[%s4 + $0x148] sm:$0xff] %vm2833, %v2746
  %2876 = vst.msk [vmem:[%s4 + $0x150] sm:$0xff] %vm2833, %v2747
  %2877 = vst.msk [vmem:[%s4 + $0x158] sm:$0xff] %vm2833, %v2748
  %2878 = vst.msk [vmem:[%s4 + $0x160] sm:$0xff] %vm2833, %v2749
  %2879 = vst.msk [vmem:[%s4 + $0x168] sm:$0xff] %vm2833, %v2750
  %2880 = vst.msk [vmem:[%s4 + $0x170] sm:$0xff] %vm2833, %v2751
  %2881 = vst.msk [vmem:[%s4 + $0x178] sm:$0xff] %vm2833, %v2752
  %2882 = vst.msk [vmem:[%s4 + $0x180] sm:$0xff] %vm2833, %v2753
  %2883 = vst.msk [vmem:[%s4 + $0x188] sm:$0xff] %vm2833, %v2754
  %2884 = vst.msk [vmem:[%s4 + $0x190] sm:$0xff] %vm2833, %v2755
  %2885 = vst.msk [vmem:[%s4 + $0x198] sm:$0xff] %vm2833, %v2756
  %2886 = vst.msk [vmem:[%s4 + $0x1a0] sm:$0xff] %vm2833, %v2757
  %2887 = vst.msk [vmem:[%s4 + $0x1a8] sm:$0xff] %vm2833, %v2758
  %2888 = vst.msk [vmem:[%s4 + $0x1b0] sm:$0xff] %vm2833, %v2759
  %2889 = vst.msk [vmem:[%s4 + $0x1b8] sm:$0xff] %vm2833, %v2760
  %2890 = vst.msk [vmem:[%s4 + $0x1c0] sm:$0xff] %vm2833, %v2761
  %2891 = vst.msk [vmem:[%s4 + $0x1c8] sm:$0xff] %vm2833, %v2762
  %2892 = vst.msk [vmem:[%s4 + $0x1d0] sm:$0xff] %vm2833, %v2763
  %2893 = vst.msk [vmem:[%s4 + $0x1d8] sm:$0xff] %vm2833, %v2764
  %2894 = vst.msk [vmem:[%s4 + $0x1e0] sm:$0xff] %vm2833, %v2765
  %2895 = vst.msk [vmem:[%s4 + $0x1e8] sm:$0xff] %vm2833, %v2766
  %2896 = vst.msk [vmem:[%s4 + $0x1f0] sm:$0xff] %vm2833, %v2767
  %2897 = vst.msk [vmem:[%s4 + $0x1f8] sm:$0xff] %vm2833, %v2768
  %2898 = vst.msk [vmem:[%s4 + $0x200] sm:$0xff] %vm2833, %v2769
  %2899 = vst.msk [vmem:[%s4 + $0x208] sm:$0xff] %vm2833, %v2770
  %2900 = vst.msk [vmem:[%s4 + $0x210] sm:$0xff] %vm2833, %v2771
  %2901 = vst.msk [vmem:[%s4 + $0x218] sm:$0xff] %vm2833, %v2772
  %2902 = vst.msk [vmem:[%s4 + $0x220] sm:$0xff] %vm2833, %v2773
  %2903 = vst.msk [vmem:[%s4 + $0x228] sm:$0xff] %vm2833, %v2774
  %2904 = vst.msk [vmem:[%s4 + $0x230] sm:$0xff] %vm2833, %v2775
  %2905 = vst.msk [vmem:[%s4 + $0x238] sm:$0xff] %vm2833, %v2776
  %2906 = vst.msk [vmem:[%s4 + $0x240] sm:$0xff] %vm2833, %v2777
  %2907 = vst.msk [vmem:[%s4 + $0x248] sm:$0xff] %vm2833, %v2778
  %2908 = vst.msk [vmem:[%s4 + $0x250] sm:$0xff] %vm2833, %v2779
  %2909 = vst.msk [vmem:[%s4 + $0x258] sm:$0xff] %vm2833, %v2780
  %2910 = vst.msk [vmem:[%s4 + $0x260] sm:$0xff] %vm2833, %v2781
  %2911 = vst.msk [vmem:[%s4 + $0x268] sm:$0xff] %vm2833, %v2782
  %2912 = vst.msk [vmem:[%s4 + $0x270] sm:$0xff] %vm2833, %v2783
  %2913 = vst.msk [vmem:[%s4 + $0x278] sm:$0xff] %vm2833, %v2784
  %2914 = vst.msk [vmem:[%s4 + $0x280] sm:$0xff] %vm2833, %v2785
  %2915 = vst.msk [vmem:[%s4 + $0x288] sm:$0xff] %vm2833, %v2786
  %2916 = vst.msk [vmem:[%s4 + $0x290] sm:$0xff] %vm2833, %v2787
  %2917 = vst.msk [vmem:[%s4 + $0x298] sm:$0xff] %vm2833, %v2788
  %2918 = vst.msk [vmem:[%s4 + $0x2a0] sm:$0xff] %vm2833, %v2789
  %2919 = vst.msk [vmem:[%s4 + $0x2a8] sm:$0xff] %vm2833, %v2790
  %2920 = vst.msk [vmem:[%s4 + $0x2b0] sm:$0xff] %vm2833, %v2791
  %2921 = vst.msk [vmem:[%s4 + $0x2b8] sm:$0xff] %vm2833, %v2792
  %2922 = vst.msk [vmem:[%s4 + $0x2c0] sm:$0xff] %vm2833, %v2793
  %2923 = vst.msk [vmem:[%s4 + $0x2c8] sm:$0xff] %vm2833, %v2794
  %2924 = vst.msk [vmem:[%s4 + $0x2d0] sm:$0xff] %vm2833, %v2795
  %2925 = vst.msk [vmem:[%s4 + $0x2d8] sm:$0xff] %vm2833, %v2796
  %2926 = vst.msk [vmem:[%s4 + $0x2e0] sm:$0xff] %vm2833, %v2797
  %2927 = vst.msk [vmem:[%s4 + $0x2e8] sm:$0xff] %vm2833, %v2798
  %2928 = vst.msk [vmem:[%s4 + $0x2f0] sm:$0xff] %vm2833, %v2799
  %2929 = vst.msk [vmem:[%s4 + $0x2f8] sm:$0xff] %vm2833, %v2800
  %2930 = vst.msk [vmem:[%s4 + $0x300] sm:$0xff] %vm2833, %v2801
  %2931 = vst.msk [vmem:[%s4 + $0x308] sm:$0xff] %vm2833, %v2802
  %2932 = vst.msk [vmem:[%s4 + $0x310] sm:$0xff] %vm2833, %v2803
  %2933 = vst.msk [vmem:[%s4 + $0x318] sm:$0xff] %vm2833, %v2804
  %2934 = vst.msk [vmem:[%s4 + $0x320] sm:$0xff] %vm2833, %v2805
  %2935 = vst.msk [vmem:[%s4 + $0x328] sm:$0xff] %vm2833, %v2806
  %2936 = vst.msk [vmem:[%s4 + $0x330] sm:$0xff] %vm2833, %v2807
  %2937 = vst.msk [vmem:[%s4 + $0x338] sm:$0xff] %vm2833, %v2808
  %2938 = vst.msk [vmem:[%s4 + $0x340] sm:$0xff] %vm2833, %v2809
  %2939 = vst.msk [vmem:[%s4 + $0x348] sm:$0xff] %vm2833, %v2810
  %2940 = vst.msk [vmem:[%s4 + $0x350] sm:$0xff] %vm2833, %v2811
  %2941 = vst.msk [vmem:[%s4 + $0x358] sm:$0xff] %vm2833, %v2812
  %2942 = vst.msk [vmem:[%s4 + $0x360] sm:$0xff] %vm2833, %v2813
  %2943 = vst.msk [vmem:[%s4 + $0x368] sm:$0xff] %vm2833, %v2814
  %2944 = vst.msk [vmem:[%s4 + $0x370] sm:$0xff] %vm2833, %v2815
  %2945 = vst.msk [vmem:[%s4 + $0x378] sm:$0xff] %vm2833, %v2816
  %2946 = vst.msk [vmem:[%s4 + $0x380] sm:$0xff] %vm2833, %v2817
  %2947 = vst.msk [vmem:[%s4 + $0x388] sm:$0xff] %vm2833, %v2818
  %2948 = vst.msk [vmem:[%s4 + $0x390] sm:$0xff] %vm2833, %v2819
  %2949 = vst.msk [vmem:[%s4 + $0x398] sm:$0xff] %vm2833, %v2820
  %2950 = vst.msk [vmem:[%s4 + $0x3a0] sm:$0xff] %vm2833, %v2821
  %2951 = vst.msk [vmem:[%s4 + $0x3a8] sm:$0xff] %vm2833, %v2822
  %2952 = vst.msk [vmem:[%s4 + $0x3b0] sm:$0xff] %vm2833, %v2823
  %2953 = vst.msk [vmem:[%s4 + $0x3b8] sm:$0xff] %vm2833, %v2824
  %2954 = vst.msk [vmem:[%s4 + $0x3c0] sm:$0xff] %vm2833, %v2825
  %2955 = vst.msk [vmem:[%s4 + $0x3c8] sm:$0xff] %vm2833, %v2826
  %2956 = vst.msk [vmem:[%s4 + $0x3d0] sm:$0xff] %vm2833, %v2827
  %2957 = vst.msk [vmem:[%s4 + $0x3d8] sm:$0xff] %vm2833, %v2828
  %2958 = vst.msk [vmem:[%s4 + $0x3e0] sm:$0xff] %vm2833, %v2829
  %2959 = vst.msk [vmem:[%s4 + $0x3e8] sm:$0xff] %vm2833, %v2830
  %2960 = vst.msk [vmem:[%s4 + $0x3f0] sm:$0xff] %vm2833, %v2831
  %2961 = vst.msk [vmem:[%s4 + $0x3f8] sm:$0xff] %vm2833, %v2832
  // Predicated region
  $region18: #{tpu_custom_call.1} parent=0 // pred_check
    _
  $region19: #{tpu_custom_call.1} parent=0 // pred_check_branch
    %2963 = sbr.rel (0) target = $region21
  $region20: #{tpu_custom_call.1} parent=0 // pred_region
    _
  $region21: #{tpu_custom_call.1} parent=0 // pred_fallthru
    _
  // Predicated region
  $region22: #{tpu_custom_call.1} parent=0 // pred_check
    _
  $region23: #{tpu_custom_call.1} parent=0 // pred_check_branch
    %2965 = sbr.rel (0) target = $region25
  $region24: #{tpu_custom_call.1} parent=0 // pred_region
    _
  $region25: #{tpu_custom_call.1} parent=0 // pred_fallthru
    _

</llo_original>
